<compile_context>
chip_gen: v6e
topology: v6e:2x2x1
jax: 0.10.0
libtpu: 0.0.40
codegen_flags: <defaults>
</compile_context>

<pallas_src>
import functools

import jax
import jax.numpy as jnp
import numpy as np
from jax.experimental import pallas as pl
from jax.experimental.pallas import tpu as pltpu


# ---------------------------------------------------------------------------
# Fused kernel: per image n
#   x_ref     : (1, C, L)  bf16, L = (H+3)*(W+2)  (padded image, spatial flattened)
#   w_ref     : (3, 3, Co, C) bf16                (conv weights, tap-major)
#   bconv_ref : (Co, 1) f32                       (conv bias)
#   whead_ref : (1, Co) f32                       (linear head weight)
#   bhead_ref : (1, 1)  f32                       (linear head bias)
#   o_ref     : (1, 1, 1) f32                     (score)
# ---------------------------------------------------------------------------
def fused_net_kernel(x_ref, w_ref, bconv_ref, whead_ref, bhead_ref, o_ref,
                     *, H, W, Wp, C, Co, row_chunk, num_chunks):
    lanes = row_chunk * Wp
    b_col = bconv_ref[...]                                        # (Co, 1) f32

    # Lane mask: each image row occupies Wp = W+2 lanes of the flattened view;
    # the last Wp-W lanes per row are wrap-around junk and must not reach the pool.
    col = jax.lax.broadcasted_iota(jnp.int32, (1, lanes), 1) % Wp
    good = col < W                                                # (1, lanes) bool

    def conv_chunk(r0):
        # conv + bias + ReLU for `row_chunk` output rows, then partial spatial sum.
        y = jnp.zeros((Co, lanes), jnp.float32)
        for ky in range(3):
            for kx in range(3):
                w_tap = w_ref[ky, kx, :, :]                       # (Co, C) bf16
                start = (r0 + ky) * Wp + kx                       # lane offset of tap
                tap = x_ref[0, :, pl.ds(start, lanes)]            # (C, lanes) bf16
                y = y + jnp.dot(w_tap, tap,
                                preferred_element_type=jnp.float32)
        y = jnp.maximum(y + b_col, 0.0)                           # bias + ReLU (f32)
        y = jnp.where(good, y, 0.0)                               # drop wrap columns
        return jnp.sum(y, axis=1, keepdims=True)                  # (Co, 1)

    if num_chunks == 1:                                           # static path (toy)
        acc = conv_chunk(0)
    else:                                                         # bounded VMEM path
        acc = jax.lax.fori_loop(
            0, num_chunks,
            lambda ci, a: a + conv_chunk(ci * row_chunk),
            jnp.zeros((Co, 1), jnp.float32))

    pooled = acc * (1.0 / (H * W))                                # true H*W divisor
    out = jnp.dot(whead_ref[...], pooled,
                  preferred_element_type=jnp.float32) + bhead_ref[...]   # (1, 1)
    o_ref[...] = out.reshape(1, 1, 1)


def _pick_row_chunk(H, Wp, max_lanes=8192):
    """Largest divisor of H whose chunk (row_chunk*Wp lanes) stays VMEM-friendly."""
    rc = 1
    for cand in range(1, H + 1):
        if H % cand == 0 and cand * Wp <= max_lanes:
            rc = cand
    return rc


# ---------------------------------------------------------------------------
# Full forward: Net(net1, net2)(x),  x in NCHW (PyTorch convention)
# ---------------------------------------------------------------------------
def net_forward(x_nchw, params, compute_dtype=jnp.bfloat16):
    w_conv, b_conv, w_head, b_head = (
        params["w_conv"], params["b_conv"], params["w_head"], params["b_head"])
    N, C, H, W = x_nchw.shape
    Co = w_conv.shape[0]
    Wp = W + 2                                   # padded width
    L = (H + 3) * Wp                             # pad rows (1, 2) so lane windows never OOB

    # Glue (cheap, HBM-contiguous): pad spatially, flatten spatial, cast to bf16.
    xp = jnp.pad(x_nchw, ((0, 0), (0, 0), (1, 2), (1, 1)))        # (N, C, H+3, W+2)
    x_flat = xp.reshape(N, C, L).astype(compute_dtype)            # lane-dense slab

    # Conv weights as (ky, kx, Co, Cin); head params as tiny 2-D f32 blocks.
    w9 = jnp.transpose(w_conv, (2, 3, 0, 1)).astype(compute_dtype)  # (3,3,Co,C)
    b_col = b_conv.reshape(Co, 1).astype(jnp.float32)
    w_head_row = w_head.reshape(1, Co).astype(jnp.float32)
    b_head_2d = b_head.reshape(1, 1).astype(jnp.float32)

    row_chunk = _pick_row_chunk(H, Wp)
    num_chunks = H // row_chunk

    kernel = functools.partial(
        fused_net_kernel, H=H, W=W, Wp=Wp, C=C, Co=Co,
        row_chunk=row_chunk, num_chunks=num_chunks)

    out = pl.pallas_call(
        kernel,
        out_shape=jax.ShapeDtypeStruct((N, 1, 1), jnp.float32),
        grid=(N,),
        in_specs=[
            pl.BlockSpec((1, C, L), lambda n: (n, 0, 0)),          # per-image slab
            pl.BlockSpec((3, 3, Co, C), lambda n: (0, 0, 0, 0)),   # resident weights
            pl.BlockSpec((Co, 1), lambda n: (0, 0)),
            pl.BlockSpec((1, Co), lambda n: (0, 0)),
            pl.BlockSpec((1, 1), lambda n: (0, 0)),
        ],
        out_specs=pl.BlockSpec((1, 1, 1), lambda n: (n, 0, 0)),
        compiler_params=pltpu.CompilerParams(
            dimension_semantics=("parallel",)),                    # megacore on v7x
    )(x_flat, w9, b_col, w_head_row, b_head_2d)
    return out.reshape(N, 1)


def make_params(key, c_in=4, c_out=8):
    k1, k2, k3, k4 = jax.random.split(key, 4)
    w_conv = jax.random.normal(k1, (c_out, c_in, 3, 3), jnp.float32) * 0.1
    b_conv = jax.random.normal(k2, (c_out,), jnp.float32) * 0.1
    w_head = jax.random.normal(k3, (c_out, 1), jnp.float32) * 0.1
    b_head = jax.random.normal(k4, (1,), jnp.float32) * 0.1
    return dict(w_conv=w_conv, b_conv=b_conv, w_head=w_head, b_head=b_head)


def reference_forward(x_nchw, params):
    # pure-JAX reference (mirrors PyTorch conv/relu/pool/linear semantics)
    w_conv, b_conv, w_head, b_head = (
        params["w_conv"], params["b_conv"], params["w_head"], params["b_head"])
    y = jax.lax.conv_general_dilated(
        x_nchw, w_conv, window_strides=(1, 1), padding=((1, 1), (1, 1)),
        dimension_numbers=("NCHW", "OIHW", "NCHW"))
    y = jax.nn.relu(y + b_conv[None, :, None, None])
    pooled = jnp.mean(y, axis=(2, 3))                             # (N, C_out)
    return pooled @ w_head + b_head[None, :]


if __name__ == "__main__":
    key = jax.random.PRNGKey(0)
    kx, kp = jax.random.split(key)
    x = jax.random.normal(kx, (2, 4, 16, 16), jnp.float32)        # NCHW, small
    params = make_params(kp)

    out = net_forward(x, params)
    out = jax.block_until_ready(out)

    # Tight check: reference fed the same bf16-rounded inputs/weights the kernel
    # streams (accumulation is f32 in both), so only fp reassociation differs.
    x_q = x.astype(jnp.bfloat16).astype(jnp.float32)
    params_q = dict(params)
    params_q["w_conv"] = params["w_conv"].astype(jnp.bfloat16).astype(jnp.float32)
    ref_q = reference_forward(x_q, params_q)
    np.testing.assert_allclose(np.asarray(out), np.asarray(ref_q),
                               rtol=1e-3, atol=1e-3)

    # Loose end-to-end check vs the full-f32 reference (bf16 streaming budget).
    ref_f32 = reference_forward(x, params)
    np.testing.assert_allclose(np.asarray(out), np.asarray(ref_f32),
                               rtol=2e-2, atol=2e-2)

    print("KERNEL_OK")
</pallas_src>

<mosaic_0001>
module attributes {stable_mosaic.version = 11 : i64} {
  func.func @fused_net_kernel(%arg0: i32, %arg1: memref<1x4x342xbf16, #tpu.memory_space<vmem>>, %arg2: memref<3x3x8x4xbf16, #tpu.memory_space<vmem>>, %arg3: memref<8x1xf32, #tpu.memory_space<vmem>>, %arg4: memref<1x8xf32, #tpu.memory_space<vmem>>, %arg5: memref<1x1xf32, #tpu.memory_space<vmem>>, %arg6: memref<1x1x1xf32, #tpu.memory_space<vmem>>) attributes {dimension_semantics = [#tpu.dimension_semantics<parallel>], iteration_bounds = array<i64: 2>, scalar_prefetch = 0 : i64, scratch_operands = 0 : i64, tpu.core_type = #tpu.core_type<tc>, window_params = [{transform_indices = @transform_0, window_bounds = array<i64: 1, 4, 342>}, {pipeline_mode = #tpu.pipeline_mode<synchronous>, transform_indices = @transform_1, window_bounds = array<i64: 3, 3, 8, 4>}, {pipeline_mode = #tpu.pipeline_mode<synchronous>, transform_indices = @transform_2, window_bounds = array<i64: 8, 1>}, {pipeline_mode = #tpu.pipeline_mode<synchronous>, transform_indices = @transform_3, window_bounds = array<i64: 1, 8>}, {pipeline_mode = #tpu.pipeline_mode<synchronous>, transform_indices = @transform_4, window_bounds = array<i64: 1, 1>}, {transform_indices = @transform_5, window_bounds = array<i64: 1, 1, 1>}]} {
    %c0 = arith.constant 0 : index
    %c0_0 = arith.constant 0 : index
    %0 = vector.load %arg3[%c0, %c0_0] : memref<8x1xf32, #tpu.memory_space<vmem>>, vector<8x1xf32>
    %1 = tpu.iota {dimensions = array<i32: 1>} : vector<1x288xi32>
    %c18_i32 = arith.constant 18 : i32
    %c0_i32 = arith.constant 0 : i32
    %2 = arith.cmpi eq, %c18_i32, %c0_i32 : i32
    %c1_i32 = arith.constant 1 : i32
    %3 = arith.select %2, %c1_i32, %c18_i32 : i32
    %4 = vector.broadcast %3 : i32 to vector<1x288xi32>
    %5 = arith.remsi %1, %4 : vector<1x288xi32>
    %c0_i32_1 = arith.constant 0 : i32
    %6 = vector.broadcast %c0_i32_1 : i32 to vector<1x288xi32>
    %7 = arith.cmpi ne, %5, %6 : vector<1x288xi32>
    %c0_i32_2 = arith.constant 0 : i32
    %8 = vector.broadcast %c0_i32_2 : i32 to vector<1x288xi32>
    %9 = arith.cmpi slt, %5, %8 : vector<1x288xi32>
    %c0_i32_3 = arith.constant 0 : i32
    %10 = arith.cmpi slt, %3, %c0_i32_3 : i32
    %11 = vector.broadcast %10 : i1 to vector<1x288xi1>
    %12 = vector.broadcast %11 : vector<1x288xi1> to vector<1x288xi1>
    %13 = arith.xori %9, %12 : vector<1x288xi1>
    %14 = arith.andi %13, %7 : vector<1x288xi1>
    %15 = vector.broadcast %3 : i32 to vector<1x288xi32>
    %16 = arith.addi %5, %15 : vector<1x288xi32>
    %17 = arith.select %14, %16, %5 : vector<1x288xi1>, vector<1x288xi32>
    %c16_i32 = arith.constant 16 : i32
    %18 = vector.broadcast %c16_i32 : i32 to vector<1x288xi32>
    %19 = arith.cmpi slt, %17, %18 : vector<1x288xi32>
    %cst = arith.constant 0.000000e+00 : f32
    %20 = vector.broadcast %cst : f32 to vector<8x288xf32>
    %c0_4 = arith.constant 0 : index
    %c0_5 = arith.constant 0 : index
    %c0_6 = arith.constant 0 : index
    %c0_7 = arith.constant 0 : index
    %21 = vector.load %arg2[%c0_4, %c0_5, %c0_6, %c0_7] : memref<3x3x8x4xbf16, #tpu.memory_space<vmem>>, vector<1x1x8x4xbf16>
    %22 = vector.shape_cast %21 : vector<1x1x8x4xbf16> to vector<8x4xbf16>
    %c0_8 = arith.constant 0 : index
    %c0_9 = arith.constant 0 : index
    %c0_10 = arith.constant 0 : index
    %23 = vector.load %arg1[%c0_8, %c0_9, %c0_10] : memref<1x4x342xbf16, #tpu.memory_space<vmem>>, vector<1x4x288xbf16>
    %24 = vector.shape_cast %23 : vector<1x4x288xbf16> to vector<4x288xbf16>
    %cst_11 = arith.constant dense<0.000000e+00> : vector<8x288xf32>
    %25 = tpu.matmul %22, %24, %cst_11 {dimension_numbers = #tpu.dot_dimension_numbers<[1], [0], [0], [1], [0, 0, 1, 1], [], []>} : vector<8x4xbf16>, vector<4x288xbf16>, vector<8x288xf32> -> vector<8x288xf32>
    %26 = arith.addf %20, %25 : vector<8x288xf32>
    %c0_12 = arith.constant 0 : index
    %c1 = arith.constant 1 : index
    %c0_13 = arith.constant 0 : index
    %c0_14 = arith.constant 0 : index
    %27 = vector.load %arg2[%c0_12, %c1, %c0_13, %c0_14] : memref<3x3x8x4xbf16, #tpu.memory_space<vmem>>, vector<1x1x8x4xbf16>
    %28 = vector.shape_cast %27 : vector<1x1x8x4xbf16> to vector<8x4xbf16>
    %c0_15 = arith.constant 0 : index
    %c0_16 = arith.constant 0 : index
    %c1_17 = arith.constant 1 : index
    %29 = vector.load %arg1[%c0_15, %c0_16, %c1_17] : memref<1x4x342xbf16, #tpu.memory_space<vmem>>, vector<1x4x288xbf16>
    %30 = vector.shape_cast %29 : vector<1x4x288xbf16> to vector<4x288xbf16>
    %cst_18 = arith.constant dense<0.000000e+00> : vector<8x288xf32>
    %31 = tpu.matmul %28, %30, %cst_18 {dimension_numbers = #tpu.dot_dimension_numbers<[1], [0], [0], [1], [0, 0, 1, 1], [], []>} : vector<8x4xbf16>, vector<4x288xbf16>, vector<8x288xf32> -> vector<8x288xf32>
    %32 = arith.addf %26, %31 : vector<8x288xf32>
    %c0_19 = arith.constant 0 : index
    %c2 = arith.constant 2 : index
    %c0_20 = arith.constant 0 : index
    %c0_21 = arith.constant 0 : index
    %33 = vector.load %arg2[%c0_19, %c2, %c0_20, %c0_21] : memref<3x3x8x4xbf16, #tpu.memory_space<vmem>>, vector<1x1x8x4xbf16>
    %34 = vector.shape_cast %33 : vector<1x1x8x4xbf16> to vector<8x4xbf16>
    %c0_22 = arith.constant 0 : index
    %c0_23 = arith.constant 0 : index
    %c2_24 = arith.constant 2 : index
    %35 = vector.load %arg1[%c0_22, %c0_23, %c2_24] : memref<1x4x342xbf16, #tpu.memory_space<vmem>>, vector<1x4x288xbf16>
    %36 = vector.shape_cast %35 : vector<1x4x288xbf16> to vector<4x288xbf16>
    %cst_25 = arith.constant dense<0.000000e+00> : vector<8x288xf32>
    %37 = tpu.matmul %34, %36, %cst_25 {dimension_numbers = #tpu.dot_dimension_numbers<[1], [0], [0], [1], [0, 0, 1, 1], [], []>} : vector<8x4xbf16>, vector<4x288xbf16>, vector<8x288xf32> -> vector<8x288xf32>
    %38 = arith.addf %32, %37 : vector<8x288xf32>
    %c1_26 = arith.constant 1 : index
    %c0_27 = arith.constant 0 : index
    %c0_28 = arith.constant 0 : index
    %c0_29 = arith.constant 0 : index
    %39 = vector.load %arg2[%c1_26, %c0_27, %c0_28, %c0_29] : memref<3x3x8x4xbf16, #tpu.memory_space<vmem>>, vector<1x1x8x4xbf16>
    %40 = vector.shape_cast %39 : vector<1x1x8x4xbf16> to vector<8x4xbf16>
    %c0_30 = arith.constant 0 : index
    %c0_31 = arith.constant 0 : index
    %c18 = arith.constant 18 : index
    %41 = vector.load %arg1[%c0_30, %c0_31, %c18] : memref<1x4x342xbf16, #tpu.memory_space<vmem>>, vector<1x4x288xbf16>
    %42 = vector.shape_cast %41 : vector<1x4x288xbf16> to vector<4x288xbf16>
    %cst_32 = arith.constant dense<0.000000e+00> : vector<8x288xf32>
    %43 = tpu.matmul %40, %42, %cst_32 {dimension_numbers = #tpu.dot_dimension_numbers<[1], [0], [0], [1], [0, 0, 1, 1], [], []>} : vector<8x4xbf16>, vector<4x288xbf16>, vector<8x288xf32> -> vector<8x288xf32>
    %44 = arith.addf %38, %43 : vector<8x288xf32>
    %c1_33 = arith.constant 1 : index
    %c1_34 = arith.constant 1 : index
    %c0_35 = arith.constant 0 : index
    %c0_36 = arith.constant 0 : index
    %45 = vector.load %arg2[%c1_33, %c1_34, %c0_35, %c0_36] : memref<3x3x8x4xbf16, #tpu.memory_space<vmem>>, vector<1x1x8x4xbf16>
    %46 = vector.shape_cast %45 : vector<1x1x8x4xbf16> to vector<8x4xbf16>
    %c0_37 = arith.constant 0 : index
    %c0_38 = arith.constant 0 : index
    %c19 = arith.constant 19 : index
    %47 = vector.load %arg1[%c0_37, %c0_38, %c19] : memref<1x4x342xbf16, #tpu.memory_space<vmem>>, vector<1x4x288xbf16>
    %48 = vector.shape_cast %47 : vector<1x4x288xbf16> to vector<4x288xbf16>
    %cst_39 = arith.constant dense<0.000000e+00> : vector<8x288xf32>
    %49 = tpu.matmul %46, %48, %cst_39 {dimension_numbers = #tpu.dot_dimension_numbers<[1], [0], [0], [1], [0, 0, 1, 1], [], []>} : vector<8x4xbf16>, vector<4x288xbf16>, vector<8x288xf32> -> vector<8x288xf32>
    %50 = arith.addf %44, %49 : vector<8x288xf32>
    %c1_40 = arith.constant 1 : index
    %c2_41 = arith.constant 2 : index
    %c0_42 = arith.constant 0 : index
    %c0_43 = arith.constant 0 : index
    %51 = vector.load %arg2[%c1_40, %c2_41, %c0_42, %c0_43] : memref<3x3x8x4xbf16, #tpu.memory_space<vmem>>, vector<1x1x8x4xbf16>
    %52 = vector.shape_cast %51 : vector<1x1x8x4xbf16> to vector<8x4xbf16>
    %c0_44 = arith.constant 0 : index
    %c0_45 = arith.constant 0 : index
    %c20 = arith.constant 20 : index
    %53 = vector.load %arg1[%c0_44, %c0_45, %c20] : memref<1x4x342xbf16, #tpu.memory_space<vmem>>, vector<1x4x288xbf16>
    %54 = vector.shape_cast %53 : vector<1x4x288xbf16> to vector<4x288xbf16>
    %cst_46 = arith.constant dense<0.000000e+00> : vector<8x288xf32>
    %55 = tpu.matmul %52, %54, %cst_46 {dimension_numbers = #tpu.dot_dimension_numbers<[1], [0], [0], [1], [0, 0, 1, 1], [], []>} : vector<8x4xbf16>, vector<4x288xbf16>, vector<8x288xf32> -> vector<8x288xf32>
    %56 = arith.addf %50, %55 : vector<8x288xf32>
    %c2_47 = arith.constant 2 : index
    %c0_48 = arith.constant 0 : index
    %c0_49 = arith.constant 0 : index
    %c0_50 = arith.constant 0 : index
    %57 = vector.load %arg2[%c2_47, %c0_48, %c0_49, %c0_50] : memref<3x3x8x4xbf16, #tpu.memory_space<vmem>>, vector<1x1x8x4xbf16>
    %58 = vector.shape_cast %57 : vector<1x1x8x4xbf16> to vector<8x4xbf16>
    %c0_51 = arith.constant 0 : index
    %c0_52 = arith.constant 0 : index
    %c36 = arith.constant 36 : index
    %59 = vector.load %arg1[%c0_51, %c0_52, %c36] : memref<1x4x342xbf16, #tpu.memory_space<vmem>>, vector<1x4x288xbf16>
    %60 = vector.shape_cast %59 : vector<1x4x288xbf16> to vector<4x288xbf16>
    %cst_53 = arith.constant dense<0.000000e+00> : vector<8x288xf32>
    %61 = tpu.matmul %58, %60, %cst_53 {dimension_numbers = #tpu.dot_dimension_numbers<[1], [0], [0], [1], [0, 0, 1, 1], [], []>} : vector<8x4xbf16>, vector<4x288xbf16>, vector<8x288xf32> -> vector<8x288xf32>
    %62 = arith.addf %56, %61 : vector<8x288xf32>
    %c2_54 = arith.constant 2 : index
    %c1_55 = arith.constant 1 : index
    %c0_56 = arith.constant 0 : index
    %c0_57 = arith.constant 0 : index
    %63 = vector.load %arg2[%c2_54, %c1_55, %c0_56, %c0_57] : memref<3x3x8x4xbf16, #tpu.memory_space<vmem>>, vector<1x1x8x4xbf16>
    %64 = vector.shape_cast %63 : vector<1x1x8x4xbf16> to vector<8x4xbf16>
    %c0_58 = arith.constant 0 : index
    %c0_59 = arith.constant 0 : index
    %c37 = arith.constant 37 : index
    %65 = vector.load %arg1[%c0_58, %c0_59, %c37] : memref<1x4x342xbf16, #tpu.memory_space<vmem>>, vector<1x4x288xbf16>
    %66 = vector.shape_cast %65 : vector<1x4x288xbf16> to vector<4x288xbf16>
    %cst_60 = arith.constant dense<0.000000e+00> : vector<8x288xf32>
    %67 = tpu.matmul %64, %66, %cst_60 {dimension_numbers = #tpu.dot_dimension_numbers<[1], [0], [0], [1], [0, 0, 1, 1], [], []>} : vector<8x4xbf16>, vector<4x288xbf16>, vector<8x288xf32> -> vector<8x288xf32>
    %68 = arith.addf %62, %67 : vector<8x288xf32>
    %c2_61 = arith.constant 2 : index
    %c2_62 = arith.constant 2 : index
    %c0_63 = arith.constant 0 : index
    %c0_64 = arith.constant 0 : index
    %69 = vector.load %arg2[%c2_61, %c2_62, %c0_63, %c0_64] : memref<3x3x8x4xbf16, #tpu.memory_space<vmem>>, vector<1x1x8x4xbf16>
    %70 = vector.shape_cast %69 : vector<1x1x8x4xbf16> to vector<8x4xbf16>
    %c0_65 = arith.constant 0 : index
    %c0_66 = arith.constant 0 : index
    %c38 = arith.constant 38 : index
    %71 = vector.load %arg1[%c0_65, %c0_66, %c38] : memref<1x4x342xbf16, #tpu.memory_space<vmem>>, vector<1x4x288xbf16>
    %72 = vector.shape_cast %71 : vector<1x4x288xbf16> to vector<4x288xbf16>
    %cst_67 = arith.constant dense<0.000000e+00> : vector<8x288xf32>
    %73 = tpu.matmul %70, %72, %cst_67 {dimension_numbers = #tpu.dot_dimension_numbers<[1], [0], [0], [1], [0, 0, 1, 1], [], []>} : vector<8x4xbf16>, vector<4x288xbf16>, vector<8x288xf32> -> vector<8x288xf32>
    %74 = arith.addf %68, %73 : vector<8x288xf32>
    %75 = vector.broadcast %0 : vector<8x1xf32> to vector<8x288xf32>
    %76 = arith.addf %74, %75 : vector<8x288xf32>
    %cst_68 = arith.constant 0.000000e+00 : f32
    %77 = vector.broadcast %cst_68 : f32 to vector<8x288xf32>
    %78 = arith.maximumf %76, %77 : vector<8x288xf32>
    %cst_69 = arith.constant 0.000000e+00 : f32
    %79 = vector.shape_cast %19 : vector<1x288xi1> to vector<1x288xi1>
    %80 = vector.broadcast %79 : vector<1x288xi1> to vector<8x288xi1>
    %81 = vector.broadcast %cst_69 : f32 to vector<8x288xf32>
    %82 = arith.select %80, %78, %81 : vector<8x288xi1>, vector<8x288xf32>
    %cst_70 = arith.constant dense<0.000000e+00> : vector<8xf32>
    %83 = vector.multi_reduction <add>, %82, %cst_70 [1] : vector<8x288xf32> to vector<8xf32>
    %84 = vector.shape_cast %83 : vector<8xf32> to vector<8x1xf32>
    %cst_71 = arith.constant 3.906250e-03 : f32
    %85 = vector.broadcast %cst_71 : f32 to vector<8x1xf32>
    %86 = arith.mulf %84, %85 : vector<8x1xf32>
    %c0_72 = arith.constant 0 : index
    %c0_73 = arith.constant 0 : index
    %87 = vector.load %arg4[%c0_72, %c0_73] : memref<1x8xf32, #tpu.memory_space<vmem>>, vector<1x8xf32>
    %cst_74 = arith.constant dense<0.000000e+00> : vector<1x1xf32>
    %88 = tpu.matmul %87, %86, %cst_74 {dimension_numbers = #tpu.dot_dimension_numbers<[1], [0], [0], [1], [0, 0, 1, 1], [], []>} : vector<1x8xf32>, vector<8x1xf32>, vector<1x1xf32> -> vector<1x1xf32>
    %c0_75 = arith.constant 0 : index
    %c0_76 = arith.constant 0 : index
    %89 = vector.load %arg5[%c0_75, %c0_76] : memref<1x1xf32, #tpu.memory_space<vmem>>, vector<1x1xf32>
    %90 = arith.addf %88, %89 : vector<1x1xf32>
    %91 = vector.shape_cast %90 : vector<1x1xf32> to vector<1x1x1xf32>
    %c0_77 = arith.constant 0 : index
    %c0_78 = arith.constant 0 : index
    %c0_79 = arith.constant 0 : index
    %92 = vector.load %arg6[%c0_77, %c0_78, %c0_79] : memref<1x1x1xf32, #tpu.memory_space<vmem>>, vector<1x1x1xf32>
    tpu.vector_store %arg6[%c0_77, %c0_78, %c0_79], %91 {strides = array<i32>} : memref<1x1x1xf32, #tpu.memory_space<vmem>>, vector<1x1x1xf32>,
    return
  }
  func.func @transform_0(%arg0: i32) -> (i32, i32, i32) {
    %c0_i32 = arith.constant 0 : i32
    %c0_i32_0 = arith.constant 0 : i32
    %c0_i32_1 = arith.constant 0 : i32
    return %arg0, %c0_i32, %c0_i32_0 : i32, i32, i32
  }
  func.func @transform_1(%arg0: i32) -> (i32, i32, i32, i32) {
    %c0_i32 = arith.constant 0 : i32
    %c0_i32_0 = arith.constant 0 : i32
    %c0_i32_1 = arith.constant 0 : i32
    %c0_i32_2 = arith.constant 0 : i32
    %c0_i32_3 = arith.constant 0 : i32
    return %c0_i32, %c0_i32_0, %c0_i32_1, %c0_i32_2 : i32, i32, i32, i32
  }
  func.func @transform_2(%arg0: i32) -> (i32, i32) {
    %c0_i32 = arith.constant 0 : i32
    %c0_i32_0 = arith.constant 0 : i32
    %c0_i32_1 = arith.constant 0 : i32
    return %c0_i32, %c0_i32_0 : i32, i32
  }
  func.func @transform_3(%arg0: i32) -> (i32, i32) {
    %c0_i32 = arith.constant 0 : i32
    %c0_i32_0 = arith.constant 0 : i32
    %c0_i32_1 = arith.constant 0 : i32
    return %c0_i32, %c0_i32_0 : i32, i32
  }
  func.func @transform_4(%arg0: i32) -> (i32, i32) {
    %c0_i32 = arith.constant 0 : i32
    %c0_i32_0 = arith.constant 0 : i32
    %c0_i32_1 = arith.constant 0 : i32
    return %c0_i32, %c0_i32_0 : i32, i32
  }
  func.func @transform_5(%arg0: i32) -> (i32, i32, i32) {
    %c0_i32 = arith.constant 0 : i32
    %c0_i32_0 = arith.constant 0 : i32
    %c0_i32_1 = arith.constant 0 : i32
    return %arg0, %c0_i32, %c0_i32_0 : i32, i32, i32
  }
}

</mosaic_0001>

<llo_original>
// kernel: tpu_custom_call.1
$region0: #{tpu_custom_call.1}
  #allocation0 [shape = 'u32[]', space=smem, size = 0x4, offset = 0x4, fixed_abs, tag = 'smem constant byte address 0x4 - core index']
  #allocation1 [shape = 'u32[144,128]{1,0:T(1,128)}', space=vmem, size = 0x12000, scoped, tag = 'internal scratch']
  #allocation2 [shape = 'f32[1,1]{1,0:T(1,128)S(1)}', space=vmem, size = 0x200, scoped, tag = 'scoped memory for tpu_custom_call.1']
  %s0 = inlined_call_operand.vmem [shape: bf16[2,4,342], index: 0, kind: input, shape index: {}]
  %s1 = inlined_call_operand.vmem [shape: bf16[3,3,8,4], index: 1, kind: input, shape index: {}]
  %s2 = inlined_call_operand.vmem [shape: f32[8,1], index: 2, kind: input, shape index: {}]
  %s3 = inlined_call_operand.vmem [shape: f32[1,8], index: 3, kind: input, shape index: {}]
  %s4 = inlined_call_operand.<no memory space> [shape: f32[1,1], index: 4, kind: input, shape index: {}]
  %s5 = inlined_call_operand.vmem [shape: f32[2,1,1], index: 5, kind: output, shape index: {}]
  %s6 = sld [smem:[#allocation0]]
  $region53: #{tpu_custom_call.1} parent=0
    _
  %s8 = ssub.s32 1, %s6
  %s9 = scalar_select 0, %s8, %s6
  %v10 = vstv %s4
  %11 = vst [vmem:[#allocation2] sm:$0x1] %v10
  loop: start=0, step=1, limit=4
  $region2: #{tpu_custom_call.1} parent=0 // loop_pre_header
    _
  $region3: #{tpu_custom_call.1} parent=0 // loop_header
    %s13 = sphi 0, %s17
    %p14 = scmp.ge.s32.totalorder %s13, 4
    %s23 = sphi 0, %s25
    %s26 = sphi 0, %s23
    %s27 = sphi 0, %s26
    %s43 = sphi 0, %s27
    %s47 = sphi 0, %s47
    %s49 = sphi 0, %s47
    %s50 = sphi 0, %s49
    %s64 = sphi 0, %s50
    %s68 = sphi 0, %s68
    %s70 = sphi 0, %s68
    %s71 = sphi 0, %s70
    %s85 = sphi 0, %s71
    %s89 = sphi 0, %s89
    %s91 = sphi 0, %s89
    %s92 = sphi 0, %s91
    %s106 = sphi 0, %s92
    %s110 = sphi 0, %s110
    %s112 = sphi 0, %s110
    %s113 = sphi 0, %s112
    %s127 = sphi 0, %s113
    %s133 = sphi 0, %s135
    %s136 = sphi 0, %s133
    %s137 = sphi 0, %s136
    %s153 = sphi 0, %s137
  $region4: #{tpu_custom_call.1} parent=0 // loop_header_branch
    %16 = sbr.rel (%p14) target = $region8
  $region5: #{tpu_custom_call.1} parent=0 // loop_body
    %s18 = ssub.s32 %s13, 1
    %s19 = ssub.s32 %s13, 2
    %s20 = sadd.s32 %s13, 1
    %s21 = ssub.s32 %s13, %s20
    %p22 = scmp.eq.s32.totalorder %s21, 0
    %s24 = sadd.s32 %s23, 1
    %s25 = scalar_select %p22, %s23, %s24
    %p28 = pneg %p22
    %p29 = scmp.eq.s32.totalorder %s13, 1
    %p30 = por %p28, %p29
    %p31 = scmp.ne.s32.totalorder %s23, %s26
    %p32 = scmp.eq.s32.totalorder %s13, 0
    %p33 = por %p31, %p32
    %p34 = scmp.ne.s32.totalorder %s23, %s26
    %p35 = scmp.eq.s32.totalorder %s18, 1
    %p36 = por %p34, %p35
    %p37 = scmp.ne.s32.totalorder %s26, %s27
    %p38 = scmp.eq.s32.totalorder %s18, 0
    %p39 = por %p37, %p38
    %p40 = scmp.ne.s32.totalorder %s26, %s27
    %p41 = scmp.eq.s32.totalorder %s19, 1
    %p42 = por %p40, %p41
    %p44 = scmp.ne.s32.totalorder %s27, %s43
    %p45 = scmp.eq.s32.totalorder %s19, 0
    %p46 = por %p44, %p45
    %s48 = sadd.s32 %s47, 1
    %p51 = scmp.eq.s32.totalorder %s13, 1
    %p52 = scmp.ne.s32.totalorder %s47, %s49
    %p53 = scmp.eq.s32.totalorder %s13, 0
    %p54 = por %p52, %p53
    %p55 = scmp.ne.s32.totalorder %s47, %s49
    %p56 = scmp.eq.s32.totalorder %s18, 1
    %p57 = por %p55, %p56
    %p58 = scmp.ne.s32.totalorder %s49, %s50
    %p59 = scmp.eq.s32.totalorder %s18, 0
    %p60 = por %p58, %p59
    %p61 = scmp.ne.s32.totalorder %s49, %s50
    %p62 = scmp.eq.s32.totalorder %s19, 1
    %p63 = por %p61, %p62
    %p65 = scmp.ne.s32.totalorder %s50, %s64
    %p66 = scmp.eq.s32.totalorder %s19, 0
    %p67 = por %p65, %p66
    %s69 = sadd.s32 %s68, 1
    %p72 = scmp.eq.s32.totalorder %s13, 1
    %p73 = scmp.ne.s32.totalorder %s68, %s70
    %p74 = scmp.eq.s32.totalorder %s13, 0
    %p75 = por %p73, %p74
    %p76 = scmp.ne.s32.totalorder %s68, %s70
    %p77 = scmp.eq.s32.totalorder %s18, 1
    %p78 = por %p76, %p77
    %p79 = scmp.ne.s32.totalorder %s70, %s71
    %p80 = scmp.eq.s32.totalorder %s18, 0
    %p81 = por %p79, %p80
    %p82 = scmp.ne.s32.totalorder %s70, %s71
    %p83 = scmp.eq.s32.totalorder %s19, 1
    %p84 = por %p82, %p83
    %p86 = scmp.ne.s32.totalorder %s71, %s85
    %p87 = scmp.eq.s32.totalorder %s19, 0
    %p88 = por %p86, %p87
    %s90 = sadd.s32 %s89, 1
    %p93 = scmp.eq.s32.totalorder %s13, 1
    %p94 = scmp.ne.s32.totalorder %s89, %s91
    %p95 = scmp.eq.s32.totalorder %s13, 0
    %p96 = por %p94, %p95
    %p97 = scmp.ne.s32.totalorder %s89, %s91
    %p98 = scmp.eq.s32.totalorder %s18, 1
    %p99 = por %p97, %p98
    %p100 = scmp.ne.s32.totalorder %s91, %s92
    %p101 = scmp.eq.s32.totalorder %s18, 0
    %p102 = por %p100, %p101
    %p103 = scmp.ne.s32.totalorder %s91, %s92
    %p104 = scmp.eq.s32.totalorder %s19, 1
    %p105 = por %p103, %p104
    %p107 = scmp.ne.s32.totalorder %s92, %s106
    %p108 = scmp.eq.s32.totalorder %s19, 0
    %p109 = por %p107, %p108
    %s111 = sadd.s32 %s110, 1
    %p114 = scmp.eq.s32.totalorder %s13, 1
    %p115 = scmp.ne.s32.totalorder %s110, %s112
    %p116 = scmp.eq.s32.totalorder %s13, 0
    %p117 = por %p115, %p116
    %p118 = scmp.ne.s32.totalorder %s110, %s112
    %p119 = scmp.eq.s32.totalorder %s18, 1
    %p120 = por %p118, %p119
    %p121 = scmp.ne.s32.totalorder %s112, %s113
    %p122 = scmp.eq.s32.totalorder %s18, 0
    %p123 = por %p121, %p122
    %p124 = scmp.ne.s32.totalorder %s112, %s113
    %p125 = scmp.eq.s32.totalorder %s19, 1
    %p126 = por %p124, %p125
    %p128 = scmp.ne.s32.totalorder %s113, %s127
    %p129 = scmp.eq.s32.totalorder %s19, 0
    %p130 = por %p128, %p129
    %s131 = ssub.s32 %s13, %s20
    %p132 = scmp.eq.s32.totalorder %s131, 0
    %s134 = sadd.s32 %s133, 1
    %s135 = scalar_select %p132, %s133, %s134
    %p138 = pneg %p132
    %p139 = scmp.eq.s32.totalorder %s13, 1
    %p140 = por %p138, %p139
    %p141 = scmp.ne.s32.totalorder %s133, %s136
    %p142 = scmp.eq.s32.totalorder %s13, 0
    %p143 = por %p141, %p142
    %p144 = scmp.ne.s32.totalorder %s133, %s136
    %p145 = scmp.eq.s32.totalorder %s18, 1
    %p146 = por %p144, %p145
    %p147 = scmp.ne.s32.totalorder %s136, %s137
    %p148 = scmp.eq.s32.totalorder %s18, 0
    %p149 = por %p147, %p148
    %p150 = scmp.ne.s32.totalorder %s136, %s137
    %p151 = scmp.eq.s32.totalorder %s19, 1
    %p152 = por %p150, %p151
    %p154 = scmp.ne.s32.totalorder %s137, %s153
    %p155 = scmp.eq.s32.totalorder %s19, 0
    %p156 = por %p154, %p155
    %p157 = scmp.le.s32.totalorder 1, %s13
    %p158 = scmp.lt.s32.totalorder %s13, 3
    %p159 = pnand %p157, %p158
    %p160 = pneg %p159
    // Predicated region
    $region9: #{tpu_custom_call.1} parent=5 // pred_check
      _
    $region10: #{tpu_custom_call.1} parent=5 // pred_check_branch
      %162 = sbr.rel (%p159) target = $region12
    $region11: #{tpu_custom_call.1} parent=5 // pred_region
      %s163 = ssub.s32 %s13, 1
      // Predicated region
      $region13: #{tpu_custom_call.1} parent=11 // pred_check
        %p164 = pneg %p60
      $region14: #{tpu_custom_call.1} parent=11 // pred_check_branch
        %166 = sbr.rel (%p164) target = $region16
      $region15: #{tpu_custom_call.1} parent=11 // pred_region
        _
      $region16: #{tpu_custom_call.1} parent=11 // pred_fallthru
        _
      // Predicated region
      $region17: #{tpu_custom_call.1} parent=11 // pred_check
        %p167 = pneg %p81
      $region18: #{tpu_custom_call.1} parent=11 // pred_check_branch
        %169 = sbr.rel (%p167) target = $region20
      $region19: #{tpu_custom_call.1} parent=11 // pred_region
        _
      $region20: #{tpu_custom_call.1} parent=11 // pred_fallthru
        _
      // Predicated region
      $region21: #{tpu_custom_call.1} parent=11 // pred_check
        %p170 = pneg %p102
      $region22: #{tpu_custom_call.1} parent=11 // pred_check_branch
        %172 = sbr.rel (%p170) target = $region24
      $region23: #{tpu_custom_call.1} parent=11 // pred_region
        _
      $region24: #{tpu_custom_call.1} parent=11 // pred_fallthru
        _
      // Predicated region
      $region25: #{tpu_custom_call.1} parent=11 // pred_check
        %p173 = pneg %p123
      $region26: #{tpu_custom_call.1} parent=11 // pred_check_branch
        %175 = sbr.rel (%p173) target = $region28
      $region27: #{tpu_custom_call.1} parent=11 // pred_region
        _
      $region28: #{tpu_custom_call.1} parent=11 // pred_fallthru
        _
    $region12: #{tpu_custom_call.1} parent=5 // pred_fallthru
      _
    %p176 = scmp.lt.s32.totalorder %s13, 2
    // Predicated region
    $region29: #{tpu_custom_call.1} parent=5 // pred_check
      %p177 = pneg %p176
    $region30: #{tpu_custom_call.1} parent=5 // pred_check_branch
      %179 = sbr.rel (%p177) target = $region32
    $region31: #{tpu_custom_call.1} parent=5 // pred_region
      // Predicated region
      $region33: #{tpu_custom_call.1} parent=31 // pred_check
        %p180 = pneg %p33
      $region34: #{tpu_custom_call.1} parent=31 // pred_check_branch
        %182 = sbr.rel (%p180) target = $region36
      $region35: #{tpu_custom_call.1} parent=31 // pred_region
        %p183 = scmp.lt.s32.totalorder %s13, 1
        %s184 = scalar_select %p183, %s13, 1
        %s185 = smul.addr %s184, 3
        %s186 = smul.addr %s185, 2
        %s187 = scalar_lea.vmem %s0, %s186
      $region36: #{tpu_custom_call.1} parent=31 // pred_fallthru
        _
    $region32: #{tpu_custom_call.1} parent=5 // pred_fallthru
      _
    %p188 = scmp.le.s32.totalorder 1, %s13
    %p189 = scmp.lt.s32.totalorder %s13, 3
    %p190 = pnand %p188, %p189
    %p191 = pneg %p190
    // Predicated region
    $region37: #{tpu_custom_call.1} parent=5 // pred_check
      _
    $region38: #{tpu_custom_call.1} parent=5 // pred_check_branch
      %193 = sbr.rel (%p190) target = $region40
    $region39: #{tpu_custom_call.1} parent=5 // pred_region
      %s194 = ssub.s32 %s13, 1
      %p195 = scmp.lt.s32.totalorder %s18, 1
      %s196 = scalar_select %p195, %s18, 1
      %s197 = smul.addr %s196, 3
      %s198 = smul.addr %s197, 2
      %s199 = scalar_lea.vmem %s0, %s198
      %p200 = pneg %p39
      %p201 = pneg %p36
      %p202 = pneg %p60
      %p203 = pneg %p57
      %p204 = pneg %p81
      %p205 = pneg %p78
      %p206 = pneg %p102
      %p207 = pneg %p99
      %p208 = pneg %p123
      %p209 = pneg %p120
      %p210 = pneg %p149
      %p211 = pneg %p146
      %p212 = scmp.lt.s32.totalorder %s18, 1
      %s213 = scalar_select %p212, %s18, 1
      %s214 = scalar_lea.vmem %s5, %s213
      %p215 = scmp.lt.s32.totalorder %s18, 1
      %s216 = scalar_select %p215, %s18, 1
      %s217 = smul.addr %s216, 3
      %s218 = smul.addr %s217, 2
      %s219 = scalar_lea.vmem %s0, %s218
      %p220 = scmp.lt.s32.totalorder %s18, 1
      %s221 = scalar_select %p220, %s18, 1
      %s222 = scalar_lea.vmem %s5, %s221
      %v224 = vld [vmem:[%s2] sm:$0xff]
      %v225 = vlaneseq
      %v226 = vand.u32 %v225, 127
      %v227 = vadd.s32 %v226, 128
      %v228 = vadd.s32 %v226, 256
      %vm229 = vcmp.lt.s32.totalorder %v226, 0
      %v230 = vsub.s32 0, %v226
      %v231 = vsel %vm229, %v230, %v226
      %v232 = vmul.u32.u64.compose %v231, 3817748708
      %v233 = vextract.low.u32 %v232
      %v234 = vextract.high.u32 %v232
      %v235 = vshrl.u32 %v234, 4
      %v236 = vmul.u32 %v235, 18
      %v237 = vsub.s32 %v231, %v236
      %v238 = vsub.s32 0, %v237
      %v239 = vsel %vm229, %v238, %v237
      %vm240 = vcmp.lt.s32.totalorder %v227, 0
      %v241 = vsub.s32 0, %v227
      %v242 = vsel %vm240, %v241, %v227
      %v243 = vmul.u32.u64.compose %v242, 3817748708
      %v244 = vextract.low.u32 %v243
      %v245 = vextract.high.u32 %v243
      %v246 = vshrl.u32 %v245, 4
      %v247 = vmul.u32 %v246, 18
      %v248 = vsub.s32 %v242, %v247
      %v249 = vsub.s32 0, %v248
      %v250 = vsel %vm240, %v249, %v248
      %vm251 = vcmp.lt.s32.totalorder %v228, 0
      %v252 = vsub.s32 0, %v228
      %v253 = vsel %vm251, %v252, %v228
      %v254 = vmul.u32.u64.compose %v253, 3817748708
      %v255 = vextract.low.u32 %v254
      %v256 = vextract.high.u32 %v254
      %v257 = vshrl.u32 %v256, 4
      %v258 = vmul.u32 %v257, 18
      %v259 = vsub.s32 %v253, %v258
      %v260 = vsub.s32 0, %v259
      %v261 = vsel %vm251, %v260, %v259
      %vm262 = vcmp.ne.s32.totalorder %v239, 0
      %vm263 = vcmp.ne.s32.totalorder %v250, 0
      %vm264 = vcmp.ne.s32.totalorder %v261, 0
      %vm265 = vcmp.lt.s32.totalorder %v239, 0
      %vm266 = vcmp.lt.s32.totalorder %v250, 0
      %vm267 = vcmp.lt.s32.totalorder %v261, 0
      %vm268 = vmand %vm265, %vm262
      %vm269 = vmand %vm266, %vm263
      %vm270 = vmand %vm267, %vm264
      %v271 = vadd.s32 %v239, 18
      %v272 = vadd.s32 %v250, 18
      %v273 = vadd.s32 %v261, 18
      %v274 = vsel %vm268, %v271, %v239
      %v275 = vsel %vm269, %v272, %v250
      %v276 = vsel %vm270, %v273, %v261
      %vm277 = vcmp.lt.s32.totalorder %v274, 16
      %vm278 = vcmp.lt.s32.totalorder %v275, 16
      %vm279 = vcmp.lt.s32.totalorder %v276, 16
      %v280 = vld [vmem:[%s1] sm:$0xf]
      %v281 = vld [vmem:[%s219] sm:$0x3f]
      %s282 = scalar_lea.vmem %s1, 4
      %v283 = vld [vmem:[%s282] sm:$0xf]
      %v285 = vcombine.high %v281, %v281
      %v287 = vunpack.c.l.s4 1983009808
      %v288 = vunpack.c.0.s8 %v287
      %v289 = vlaneseq
      %v290 = vshrl.u32 %v289, 7
      %v291 = vsub.s32 %v288, %v290
      %v292 = vrot.slane %v281, %v291
      %v294 = vunpack.c.l.s4 1983009808
      %v295 = vunpack.c.0.s8 %v294
      %v296 = vlaneseq
      %v297 = vshrl.u32 %v296, 7
      %v298 = vsub.s32 %v295, %v297
      %v299 = vrot.slane %v285, %v298
      %v300 = vcombine.high %v292, %v292
      %301 = vrot.lane.b32.xlu0 %v292, 127
      %v302 = vpop.permute.xlu0 %301
      %303 = vrot.lane.b32.xlu0 %v300, 127
      %v304 = vpop.permute.xlu0 %303
      %305 = vrot.lane.b32.xlu0 %v299, 127
      %v306 = vpop.permute.xlu0 %305
      %vm307 = vcmask 1039360
      %v308 = vsel %vm307, %v302, %v304
      %v309 = vsel %vm307, %v304, %v306
      %vm310 = vcmask 31744
      %v312 = vsel %vm310, %v283, 0
      %vm314 = vcmask 1041408
      %v316 = vsel %vm314, %v308, 0
      %v319 = vsel %vm314, %v309, 0
      %v322 = vsel %vm314, %v306, 0
      %324 = vmatprep.subr.bf16.mxu0 0
      %325 = vmatpush1.bf16.msra.mxu0 0
      %326 = vmatprep.subr.bf16.mxu0 0
      %327 = vmatpush1.bf16.msra.mxu0 0
      %328 = vmatprep.subr.bf16.mxu0 0
      %329 = vmatpush1.bf16.msra.mxu0 0
      %330 = vmatprep.subr.bf16.mxu0 0
      %331 = vmatpush1.bf16.msra.mxu0 0
      %332 = vmatprep.subr.bf16.mxu0 0
      %333 = vmatpush1.bf16.msra.mxu0 0
      %334 = vmatprep.subr.bf16.mxu0 0
      %335 = vmatpush1.bf16.msra.mxu0 0
      %336 = vmatprep.subr.bf16.mxu0 0
      %337 = vmatpush1.bf16.msra.mxu0 0
      %338 = vmatprep.subr.bf16.mxu0 %v319
      %339 = vmatpush1.bf16.msra.mxu0 %v316
      %340 = vmatprep.subr.bf16.mxu0 0
      %341 = vmatpush2.bf16.msra.mxu0 0
      %342 = vmatprep.subr.bf16.mxu0 0
      %343 = vmatpush2.bf16.msra.mxu0 0
      %344 = vmatprep.subr.bf16.mxu0 0
      %345 = vmatpush2.bf16.msra.mxu0 0
      %346 = vmatprep.subr.bf16.mxu0 0
      %347 = vmatpush2.bf16.msra.mxu0 0
      %348 = vmatprep.subr.bf16.mxu0 0
      %349 = vmatpush2.bf16.msra.mxu0 0
      %350 = vmatprep.subr.bf16.mxu0 0
      %351 = vmatpush2.bf16.msra.mxu0 0
      %352 = vmatprep.subr.bf16.mxu0 0
      %353 = vmatpush2.bf16.msra.mxu0 0
      %354 = vmatprep.subr.bf16.mxu0 0
      %355 = vmatpush2.bf16.msra.mxu0 0
      %356 = vmatprep.mubr.bf16.mxu0 0
      %357 = vmatmul.mubr.bf16.gmra.mxu0 %v312
      %v358 = vpop.f32.mrf.mxu0
      %v359 = vadd.f32 0.0, %v358
      %v360 = vpop.f32.mrf.mxu0
      %v361 = vadd.f32 0.0, %v360
      %v362 = vpop.f32.mrf.mxu0
      %v363 = vpop.f32.mrf.mxu0
      %364 = vdwg.mxu0
      %365 = vmatprep.subr.bf16.mxu0 0
      %366 = vmatpush1.bf16.msra.mxu0 0
      %367 = vmatprep.subr.bf16.mxu0 0
      %368 = vmatpush1.bf16.msra.mxu0 0
      %369 = vmatprep.subr.bf16.mxu0 0
      %370 = vmatpush1.bf16.msra.mxu0 0
      %371 = vmatprep.subr.bf16.mxu0 0
      %372 = vmatpush1.bf16.msra.mxu0 0
      %373 = vmatprep.subr.bf16.mxu0 0
      %374 = vmatpush1.bf16.msra.mxu0 0
      %375 = vmatprep.subr.bf16.mxu0 0
      %376 = vmatpush1.bf16.msra.mxu0 0
      %377 = vmatprep.subr.bf16.mxu0 0
      %378 = vmatpush1.bf16.msra.mxu0 0
      %379 = vmatprep.subr.bf16.mxu0 0
      %380 = vmatpush1.bf16.msra.mxu0 %v322
      %381 = vmatprep.subr.bf16.mxu0 0
      %382 = vmatpush2.bf16.msra.mxu0 0
      %383 = vmatprep.subr.bf16.mxu0 0
      %384 = vmatpush2.bf16.msra.mxu0 0
      %385 = vmatprep.subr.bf16.mxu0 0
      %386 = vmatpush2.bf16.msra.mxu0 0
      %387 = vmatprep.subr.bf16.mxu0 0
      %388 = vmatpush2.bf16.msra.mxu0 0
      %389 = vmatprep.subr.bf16.mxu0 0
      %390 = vmatpush2.bf16.msra.mxu0 0
      %391 = vmatprep.subr.bf16.mxu0 0
      %392 = vmatpush2.bf16.msra.mxu0 0
      %393 = vmatprep.subr.bf16.mxu0 0
      %394 = vmatpush2.bf16.msra.mxu0 0
      %395 = vmatprep.subr.bf16.mxu0 0
      %396 = vmatpush2.bf16.msra.mxu0 0
      %397 = vmatprep.mubr.bf16.mxu0 0
      %398 = vmatmul.mubr.bf16.gmra.mxu0 %v312
      %v399 = vpop.f32.mrf.mxu0
      %v400 = vadd.f32 0.0, %v399
      %v401 = vpop.f32.mrf.mxu0
      %v402 = vpop.f32.mrf.mxu0
      %v403 = vpop.f32.mrf.mxu0
      %404 = vdwg.mxu0
      %v406 = vsel %vm310, %v280, 0
      %v409 = vsel %vm314, %v292, 0
      %v412 = vsel %vm314, %v300, 0
      %v415 = vsel %vm314, %v299, 0
      %417 = vmatprep.subr.bf16.mxu0 0
      %418 = vmatpush1.bf16.msra.mxu0 0
      %419 = vmatprep.subr.bf16.mxu0 0
      %420 = vmatpush1.bf16.msra.mxu0 0
      %421 = vmatprep.subr.bf16.mxu0 0
      %422 = vmatpush1.bf16.msra.mxu0 0
      %423 = vmatprep.subr.bf16.mxu0 0
      %424 = vmatpush1.bf16.msra.mxu0 0
      %425 = vmatprep.subr.bf16.mxu0 0
      %426 = vmatpush1.bf16.msra.mxu0 0
      %427 = vmatprep.subr.bf16.mxu0 0
      %428 = vmatpush1.bf16.msra.mxu0 0
      %429 = vmatprep.subr.bf16.mxu0 0
      %430 = vmatpush1.bf16.msra.mxu0 0
      %431 = vmatprep.subr.bf16.mxu0 %v412
      %432 = vmatpush1.bf16.msra.mxu0 %v409
      %433 = vmatprep.subr.bf16.mxu0 0
      %434 = vmatpush2.bf16.msra.mxu0 0
      %435 = vmatprep.subr.bf16.mxu0 0
      %436 = vmatpush2.bf16.msra.mxu0 0
      %437 = vmatprep.subr.bf16.mxu0 0
      %438 = vmatpush2.bf16.msra.mxu0 0
      %439 = vmatprep.subr.bf16.mxu0 0
      %440 = vmatpush2.bf16.msra.mxu0 0
      %441 = vmatprep.subr.bf16.mxu0 0
      %442 = vmatpush2.bf16.msra.mxu0 0
      %443 = vmatprep.subr.bf16.mxu0 0
      %444 = vmatpush2.bf16.msra.mxu0 0
      %445 = vmatprep.subr.bf16.mxu0 0
      %446 = vmatpush2.bf16.msra.mxu0 0
      %447 = vmatprep.subr.bf16.mxu0 0
      %448 = vmatpush2.bf16.msra.mxu0 0
      %449 = vmatprep.mubr.bf16.mxu0 0
      %450 = vmatmul.mubr.bf16.gmra.mxu0 %v406
      %v451 = vpop.f32.mrf.mxu0
      %v452 = vadd.f32 %v359, %v451
      %v453 = vpop.f32.mrf.mxu0
      %v454 = vadd.f32 %v361, %v453
      %v455 = vpop.f32.mrf.mxu0
      %v456 = vpop.f32.mrf.mxu0
      %457 = vdwg.mxu0
      %458 = vmatprep.subr.bf16.mxu0 0
      %459 = vmatpush1.bf16.msra.mxu0 0
      %460 = vmatprep.subr.bf16.mxu0 0
      %461 = vmatpush1.bf16.msra.mxu0 0
      %462 = vmatprep.subr.bf16.mxu0 0
      %463 = vmatpush1.bf16.msra.mxu0 0
      %464 = vmatprep.subr.bf16.mxu0 0
      %465 = vmatpush1.bf16.msra.mxu0 0
      %466 = vmatprep.subr.bf16.mxu0 0
      %467 = vmatpush1.bf16.msra.mxu0 0
      %468 = vmatprep.subr.bf16.mxu0 0
      %469 = vmatpush1.bf16.msra.mxu0 0
      %470 = vmatprep.subr.bf16.mxu0 0
      %471 = vmatpush1.bf16.msra.mxu0 0
      %472 = vmatprep.subr.bf16.mxu0 0
      %473 = vmatpush1.bf16.msra.mxu0 %v415
      %474 = vmatprep.subr.bf16.mxu0 0
      %475 = vmatpush2.bf16.msra.mxu0 0
      %476 = vmatprep.subr.bf16.mxu0 0
      %477 = vmatpush2.bf16.msra.mxu0 0
      %478 = vmatprep.subr.bf16.mxu0 0
      %479 = vmatpush2.bf16.msra.mxu0 0
      %480 = vmatprep.subr.bf16.mxu0 0
      %481 = vmatpush2.bf16.msra.mxu0 0
      %482 = vmatprep.subr.bf16.mxu0 0
      %483 = vmatpush2.bf16.msra.mxu0 0
      %484 = vmatprep.subr.bf16.mxu0 0
      %485 = vmatpush2.bf16.msra.mxu0 0
      %486 = vmatprep.subr.bf16.mxu0 0
      %487 = vmatpush2.bf16.msra.mxu0 0
      %488 = vmatprep.subr.bf16.mxu0 0
      %489 = vmatpush2.bf16.msra.mxu0 0
      %490 = vmatprep.mubr.bf16.mxu0 0
      %491 = vmatmul.mubr.bf16.gmra.mxu0 %v406
      %v492 = vpop.f32.mrf.mxu0
      %v493 = vadd.f32 %v400, %v492
      %v494 = vpop.f32.mrf.mxu0
      %v495 = vpop.f32.mrf.mxu0
      %v496 = vpop.f32.mrf.mxu0
      %497 = vdwg.mxu0
      %s498 = scalar_lea.vmem %s1, 8
      %v499 = vld [vmem:[%s498] sm:$0xf]
      %v500 = vld [vmem:[%s219] sm:$0x3f]
      %v502 = vcombine.high %v500, %v500
      %v504 = vunpack.c.l.s4 1983009808
      %v505 = vunpack.c.0.s8 %v504
      %v506 = vlaneseq
      %v507 = vshrl.u32 %v506, 7
      %v508 = vsub.s32 %v505, %v507
      %v509 = vrot.slane %v500, %v508
      %v511 = vunpack.c.l.s4 1983009808
      %v512 = vunpack.c.0.s8 %v511
      %v513 = vlaneseq
      %v514 = vshrl.u32 %v513, 7
      %v515 = vsub.s32 %v512, %v514
      %v516 = vrot.slane %v502, %v515
      %v517 = vcombine.high %v509, %v509
      %518 = vrot.lane.b32.xlu0 %v509, 126
      %v519 = vpop.permute.xlu0 %518
      %520 = vrot.lane.b32.xlu0 %v517, 126
      %v521 = vpop.permute.xlu0 %520
      %522 = vrot.lane.b32.xlu0 %v516, 126
      %v523 = vpop.permute.xlu0 %522
      %vm524 = vcmask 1031168
      %v525 = vsel %vm524, %v519, %v521
      %v526 = vsel %vm524, %v521, %v523
      %v528 = vsel %vm310, %v499, 0
      %v531 = vsel %vm314, %v525, 0
      %v534 = vsel %vm314, %v526, 0
      %v537 = vsel %vm314, %v523, 0
      %539 = vmatprep.subr.bf16.mxu0 0
      %540 = vmatpush1.bf16.msra.mxu0 0
      %541 = vmatprep.subr.bf16.mxu0 0
      %542 = vmatpush1.bf16.msra.mxu0 0
      %543 = vmatprep.subr.bf16.mxu0 0
      %544 = vmatpush1.bf16.msra.mxu0 0
      %545 = vmatprep.subr.bf16.mxu0 0
      %546 = vmatpush1.bf16.msra.mxu0 0
      %547 = vmatprep.subr.bf16.mxu0 0
      %548 = vmatpush1.bf16.msra.mxu0 0
      %549 = vmatprep.subr.bf16.mxu0 0
      %550 = vmatpush1.bf16.msra.mxu0 0
      %551 = vmatprep.subr.bf16.mxu0 0
      %552 = vmatpush1.bf16.msra.mxu0 0
      %553 = vmatprep.subr.bf16.mxu0 %v534
      %554 = vmatpush1.bf16.msra.mxu0 %v531
      %555 = vmatprep.subr.bf16.mxu0 0
      %556 = vmatpush2.bf16.msra.mxu0 0
      %557 = vmatprep.subr.bf16.mxu0 0
      %558 = vmatpush2.bf16.msra.mxu0 0
      %559 = vmatprep.subr.bf16.mxu0 0
      %560 = vmatpush2.bf16.msra.mxu0 0
      %561 = vmatprep.subr.bf16.mxu0 0
      %562 = vmatpush2.bf16.msra.mxu0 0
      %563 = vmatprep.subr.bf16.mxu0 0
      %564 = vmatpush2.bf16.msra.mxu0 0
      %565 = vmatprep.subr.bf16.mxu0 0
      %566 = vmatpush2.bf16.msra.mxu0 0
      %567 = vmatprep.subr.bf16.mxu0 0
      %568 = vmatpush2.bf16.msra.mxu0 0
      %569 = vmatprep.subr.bf16.mxu0 0
      %570 = vmatpush2.bf16.msra.mxu0 0
      %571 = vmatprep.mubr.bf16.mxu0 0
      %572 = vmatmul.mubr.bf16.gmra.mxu0 %v528
      %v573 = vpop.f32.mrf.mxu0
      %v574 = vadd.f32 0.0, %v573
      %v575 = vpop.f32.mrf.mxu0
      %v576 = vadd.f32 0.0, %v575
      %v577 = vpop.f32.mrf.mxu0
      %v578 = vpop.f32.mrf.mxu0
      %579 = vdwg.mxu0
      %580 = vmatprep.subr.bf16.mxu0 0
      %581 = vmatpush1.bf16.msra.mxu0 0
      %582 = vmatprep.subr.bf16.mxu0 0
      %583 = vmatpush1.bf16.msra.mxu0 0
      %584 = vmatprep.subr.bf16.mxu0 0
      %585 = vmatpush1.bf16.msra.mxu0 0
      %586 = vmatprep.subr.bf16.mxu0 0
      %587 = vmatpush1.bf16.msra.mxu0 0
      %588 = vmatprep.subr.bf16.mxu0 0
      %589 = vmatpush1.bf16.msra.mxu0 0
      %590 = vmatprep.subr.bf16.mxu0 0
      %591 = vmatpush1.bf16.msra.mxu0 0
      %592 = vmatprep.subr.bf16.mxu0 0
      %593 = vmatpush1.bf16.msra.mxu0 0
      %594 = vmatprep.subr.bf16.mxu0 0
      %595 = vmatpush1.bf16.msra.mxu0 %v537
      %596 = vmatprep.subr.bf16.mxu0 0
      %597 = vmatpush2.bf16.msra.mxu0 0
      %598 = vmatprep.subr.bf16.mxu0 0
      %599 = vmatpush2.bf16.msra.mxu0 0
      %600 = vmatprep.subr.bf16.mxu0 0
      %601 = vmatpush2.bf16.msra.mxu0 0
      %602 = vmatprep.subr.bf16.mxu0 0
      %603 = vmatpush2.bf16.msra.mxu0 0
      %604 = vmatprep.subr.bf16.mxu0 0
      %605 = vmatpush2.bf16.msra.mxu0 0
      %606 = vmatprep.subr.bf16.mxu0 0
      %607 = vmatpush2.bf16.msra.mxu0 0
      %608 = vmatprep.subr.bf16.mxu0 0
      %609 = vmatpush2.bf16.msra.mxu0 0
      %610 = vmatprep.subr.bf16.mxu0 0
      %611 = vmatpush2.bf16.msra.mxu0 0
      %612 = vmatprep.mubr.bf16.mxu0 0
      %613 = vmatmul.mubr.bf16.gmra.mxu0 %v528
      %v614 = vpop.f32.mrf.mxu0
      %v615 = vadd.f32 0.0, %v614
      %v616 = vpop.f32.mrf.mxu0
      %v617 = vpop.f32.mrf.mxu0
      %v618 = vpop.f32.mrf.mxu0
      %619 = vdwg.mxu0
      %v620 = vadd.f32 %v452, %v574
      %v621 = vadd.f32 %v454, %v576
      %v622 = vadd.f32 %v493, %v615
      %s623 = scalar_lea.vmem %s1, 12
      %v624 = vld [vmem:[%s623] sm:$0xf]
      %v625 = vld [vmem:[%s219] sm:$0x3f]
      %v627 = vcombine.high %v625, %v625
      %v629 = vunpack.c.l.s4 1983009808
      %v630 = vunpack.c.0.s8 %v629
      %v631 = vlaneseq
      %v632 = vshrl.u32 %v631, 7
      %v633 = vsub.s32 %v630, %v632
      %v634 = vrot.slane %v625, %v633
      %v636 = vunpack.c.l.s4 1983009808
      %v637 = vunpack.c.0.s8 %v636
      %v638 = vlaneseq
      %v639 = vshrl.u32 %v638, 7
      %v640 = vsub.s32 %v637, %v639
      %v641 = vrot.slane %v627, %v640
      %v642 = vcombine.high %v634, %v634
      %643 = vrot.lane.b32.xlu0 %v634, 110
      %v644 = vpop.permute.xlu0 %643
      %645 = vrot.lane.b32.xlu0 %v642, 110
      %v646 = vpop.permute.xlu0 %645
      %647 = vrot.lane.b32.xlu0 %v641, 110
      %v648 = vpop.permute.xlu0 %647
      %vm649 = vcmask 900096
      %v650 = vsel %vm649, %v644, %v646
      %v651 = vsel %vm649, %v646, %v648
      %v653 = vsel %vm310, %v624, 0
      %v656 = vsel %vm314, %v650, 0
      %v659 = vsel %vm314, %v651, 0
      %v662 = vsel %vm314, %v648, 0
      %664 = vmatprep.subr.bf16.mxu0 0
      %665 = vmatpush1.bf16.msra.mxu0 0
      %666 = vmatprep.subr.bf16.mxu0 0
      %667 = vmatpush1.bf16.msra.mxu0 0
      %668 = vmatprep.subr.bf16.mxu0 0
      %669 = vmatpush1.bf16.msra.mxu0 0
      %670 = vmatprep.subr.bf16.mxu0 0
      %671 = vmatpush1.bf16.msra.mxu0 0
      %672 = vmatprep.subr.bf16.mxu0 0
      %673 = vmatpush1.bf16.msra.mxu0 0
      %674 = vmatprep.subr.bf16.mxu0 0
      %675 = vmatpush1.bf16.msra.mxu0 0
      %676 = vmatprep.subr.bf16.mxu0 0
      %677 = vmatpush1.bf16.msra.mxu0 0
      %678 = vmatprep.subr.bf16.mxu0 %v659
      %679 = vmatpush1.bf16.msra.mxu0 %v656
      %680 = vmatprep.subr.bf16.mxu0 0
      %681 = vmatpush2.bf16.msra.mxu0 0
      %682 = vmatprep.subr.bf16.mxu0 0
      %683 = vmatpush2.bf16.msra.mxu0 0
      %684 = vmatprep.subr.bf16.mxu0 0
      %685 = vmatpush2.bf16.msra.mxu0 0
      %686 = vmatprep.subr.bf16.mxu0 0
      %687 = vmatpush2.bf16.msra.mxu0 0
      %688 = vmatprep.subr.bf16.mxu0 0
      %689 = vmatpush2.bf16.msra.mxu0 0
      %690 = vmatprep.subr.bf16.mxu0 0
      %691 = vmatpush2.bf16.msra.mxu0 0
      %692 = vmatprep.subr.bf16.mxu0 0
      %693 = vmatpush2.bf16.msra.mxu0 0
      %694 = vmatprep.subr.bf16.mxu0 0
      %695 = vmatpush2.bf16.msra.mxu0 0
      %696 = vmatprep.mubr.bf16.mxu0 0
      %697 = vmatmul.mubr.bf16.gmra.mxu0 %v653
      %v698 = vpop.f32.mrf.mxu0
      %v699 = vadd.f32 0.0, %v698
      %v700 = vpop.f32.mrf.mxu0
      %v701 = vadd.f32 0.0, %v700
      %v702 = vpop.f32.mrf.mxu0
      %v703 = vpop.f32.mrf.mxu0
      %704 = vdwg.mxu0
      %705 = vmatprep.subr.bf16.mxu0 0
      %706 = vmatpush1.bf16.msra.mxu0 0
      %707 = vmatprep.subr.bf16.mxu0 0
      %708 = vmatpush1.bf16.msra.mxu0 0
      %709 = vmatprep.subr.bf16.mxu0 0
      %710 = vmatpush1.bf16.msra.mxu0 0
      %711 = vmatprep.subr.bf16.mxu0 0
      %712 = vmatpush1.bf16.msra.mxu0 0
      %713 = vmatprep.subr.bf16.mxu0 0
      %714 = vmatpush1.bf16.msra.mxu0 0
      %715 = vmatprep.subr.bf16.mxu0 0
      %716 = vmatpush1.bf16.msra.mxu0 0
      %717 = vmatprep.subr.bf16.mxu0 0
      %718 = vmatpush1.bf16.msra.mxu0 0
      %719 = vmatprep.subr.bf16.mxu0 0
      %720 = vmatpush1.bf16.msra.mxu0 %v662
      %721 = vmatprep.subr.bf16.mxu0 0
      %722 = vmatpush2.bf16.msra.mxu0 0
      %723 = vmatprep.subr.bf16.mxu0 0
      %724 = vmatpush2.bf16.msra.mxu0 0
      %725 = vmatprep.subr.bf16.mxu0 0
      %726 = vmatpush2.bf16.msra.mxu0 0
      %727 = vmatprep.subr.bf16.mxu0 0
      %728 = vmatpush2.bf16.msra.mxu0 0
      %729 = vmatprep.subr.bf16.mxu0 0
      %730 = vmatpush2.bf16.msra.mxu0 0
      %731 = vmatprep.subr.bf16.mxu0 0
      %732 = vmatpush2.bf16.msra.mxu0 0
      %733 = vmatprep.subr.bf16.mxu0 0
      %734 = vmatpush2.bf16.msra.mxu0 0
      %735 = vmatprep.subr.bf16.mxu0 0
      %736 = vmatpush2.bf16.msra.mxu0 0
      %737 = vmatprep.mubr.bf16.mxu0 0
      %738 = vmatmul.mubr.bf16.gmra.mxu0 %v653
      %v739 = vpop.f32.mrf.mxu0
      %v740 = vadd.f32 0.0, %v739
      %v741 = vpop.f32.mrf.mxu0
      %v742 = vpop.f32.mrf.mxu0
      %v743 = vpop.f32.mrf.mxu0
      %744 = vdwg.mxu0
      %v745 = vadd.f32 %v620, %v699
      %v746 = vadd.f32 %v621, %v701
      %v747 = vadd.f32 %v622, %v740
      %s748 = scalar_lea.vmem %s1, 16
      %v749 = vld [vmem:[%s748] sm:$0xf]
      %v750 = vld [vmem:[%s219] sm:$0x3f]
      %v752 = vcombine.high %v750, %v750
      %v754 = vunpack.c.l.s4 1983009808
      %v755 = vunpack.c.0.s8 %v754
      %v756 = vlaneseq
      %v757 = vshrl.u32 %v756, 7
      %v758 = vsub.s32 %v755, %v757
      %v759 = vrot.slane %v750, %v758
      %v761 = vunpack.c.l.s4 1983009808
      %v762 = vunpack.c.0.s8 %v761
      %v763 = vlaneseq
      %v764 = vshrl.u32 %v763, 7
      %v765 = vsub.s32 %v762, %v764
      %v766 = vrot.slane %v752, %v765
      %v767 = vcombine.high %v759, %v759
      %768 = vrot.lane.b32.xlu0 %v759, 109
      %v769 = vpop.permute.xlu0 %768
      %770 = vrot.lane.b32.xlu0 %v767, 109
      %v771 = vpop.permute.xlu0 %770
      %772 = vrot.lane.b32.xlu0 %v766, 109
      %v773 = vpop.permute.xlu0 %772
      %vm774 = vcmask 891904
      %v775 = vsel %vm774, %v769, %v771
      %v776 = vsel %vm774, %v771, %v773
      %v778 = vsel %vm310, %v749, 0
      %v781 = vsel %vm314, %v775, 0
      %v784 = vsel %vm314, %v776, 0
      %v787 = vsel %vm314, %v773, 0
      %789 = vmatprep.subr.bf16.mxu0 0
      %790 = vmatpush1.bf16.msra.mxu0 0
      %791 = vmatprep.subr.bf16.mxu0 0
      %792 = vmatpush1.bf16.msra.mxu0 0
      %793 = vmatprep.subr.bf16.mxu0 0
      %794 = vmatpush1.bf16.msra.mxu0 0
      %795 = vmatprep.subr.bf16.mxu0 0
      %796 = vmatpush1.bf16.msra.mxu0 0
      %797 = vmatprep.subr.bf16.mxu0 0
      %798 = vmatpush1.bf16.msra.mxu0 0
      %799 = vmatprep.subr.bf16.mxu0 0
      %800 = vmatpush1.bf16.msra.mxu0 0
      %801 = vmatprep.subr.bf16.mxu0 0
      %802 = vmatpush1.bf16.msra.mxu0 0
      %803 = vmatprep.subr.bf16.mxu0 %v784
      %804 = vmatpush1.bf16.msra.mxu0 %v781
      %805 = vmatprep.subr.bf16.mxu0 0
      %806 = vmatpush2.bf16.msra.mxu0 0
      %807 = vmatprep.subr.bf16.mxu0 0
      %808 = vmatpush2.bf16.msra.mxu0 0
      %809 = vmatprep.subr.bf16.mxu0 0
      %810 = vmatpush2.bf16.msra.mxu0 0
      %811 = vmatprep.subr.bf16.mxu0 0
      %812 = vmatpush2.bf16.msra.mxu0 0
      %813 = vmatprep.subr.bf16.mxu0 0
      %814 = vmatpush2.bf16.msra.mxu0 0
      %815 = vmatprep.subr.bf16.mxu0 0
      %816 = vmatpush2.bf16.msra.mxu0 0
      %817 = vmatprep.subr.bf16.mxu0 0
      %818 = vmatpush2.bf16.msra.mxu0 0
      %819 = vmatprep.subr.bf16.mxu0 0
      %820 = vmatpush2.bf16.msra.mxu0 0
      %821 = vmatprep.mubr.bf16.mxu0 0
      %822 = vmatmul.mubr.bf16.gmra.mxu0 %v778
      %v823 = vpop.f32.mrf.mxu0
      %v824 = vadd.f32 0.0, %v823
      %v825 = vpop.f32.mrf.mxu0
      %v826 = vadd.f32 0.0, %v825
      %v827 = vpop.f32.mrf.mxu0
      %v828 = vpop.f32.mrf.mxu0
      %829 = vdwg.mxu0
      %830 = vmatprep.subr.bf16.mxu0 0
      %831 = vmatpush1.bf16.msra.mxu0 0
      %832 = vmatprep.subr.bf16.mxu0 0
      %833 = vmatpush1.bf16.msra.mxu0 0
      %834 = vmatprep.subr.bf16.mxu0 0
      %835 = vmatpush1.bf16.msra.mxu0 0
      %836 = vmatprep.subr.bf16.mxu0 0
      %837 = vmatpush1.bf16.msra.mxu0 0
      %838 = vmatprep.subr.bf16.mxu0 0
      %839 = vmatpush1.bf16.msra.mxu0 0
      %840 = vmatprep.subr.bf16.mxu0 0
      %841 = vmatpush1.bf16.msra.mxu0 0
      %842 = vmatprep.subr.bf16.mxu0 0
      %843 = vmatpush1.bf16.msra.mxu0 0
      %844 = vmatprep.subr.bf16.mxu0 0
      %845 = vmatpush1.bf16.msra.mxu0 %v787
      %846 = vmatprep.subr.bf16.mxu0 0
      %847 = vmatpush2.bf16.msra.mxu0 0
      %848 = vmatprep.subr.bf16.mxu0 0
      %849 = vmatpush2.bf16.msra.mxu0 0
      %850 = vmatprep.subr.bf16.mxu0 0
      %851 = vmatpush2.bf16.msra.mxu0 0
      %852 = vmatprep.subr.bf16.mxu0 0
      %853 = vmatpush2.bf16.msra.mxu0 0
      %854 = vmatprep.subr.bf16.mxu0 0
      %855 = vmatpush2.bf16.msra.mxu0 0
      %856 = vmatprep.subr.bf16.mxu0 0
      %857 = vmatpush2.bf16.msra.mxu0 0
      %858 = vmatprep.subr.bf16.mxu0 0
      %859 = vmatpush2.bf16.msra.mxu0 0
      %860 = vmatprep.subr.bf16.mxu0 0
      %861 = vmatpush2.bf16.msra.mxu0 0
      %862 = vmatprep.mubr.bf16.mxu0 0
      %863 = vmatmul.mubr.bf16.gmra.mxu0 %v778
      %v864 = vpop.f32.mrf.mxu0
      %v865 = vadd.f32 0.0, %v864
      %v866 = vpop.f32.mrf.mxu0
      %v867 = vpop.f32.mrf.mxu0
      %v868 = vpop.f32.mrf.mxu0
      %869 = vdwg.mxu0
      %v870 = vadd.f32 %v745, %v824
      %v871 = vadd.f32 %v746, %v826
      %v872 = vadd.f32 %v747, %v865
      %s873 = scalar_lea.vmem %s1, 20
      %v874 = vld [vmem:[%s873] sm:$0xf]
      %v875 = vld [vmem:[%s219] sm:$0x3f]
      %v877 = vcombine.high %v875, %v875
      %v879 = vunpack.c.l.s4 1983009808
      %v880 = vunpack.c.0.s8 %v879
      %v881 = vlaneseq
      %v882 = vshrl.u32 %v881, 7
      %v883 = vsub.s32 %v880, %v882
      %v884 = vrot.slane %v875, %v883
      %v886 = vunpack.c.l.s4 1983009808
      %v887 = vunpack.c.0.s8 %v886
      %v888 = vlaneseq
      %v889 = vshrl.u32 %v888, 7
      %v890 = vsub.s32 %v887, %v889
      %v891 = vrot.slane %v877, %v890
      %v892 = vcombine.high %v884, %v884
      %893 = vrot.lane.b32.xlu0 %v884, 108
      %v894 = vpop.permute.xlu0 %893
      %895 = vrot.lane.b32.xlu0 %v892, 108
      %v896 = vpop.permute.xlu0 %895
      %897 = vrot.lane.b32.xlu0 %v891, 108
      %v898 = vpop.permute.xlu0 %897
      %vm899 = vcmask 883712
      %v900 = vsel %vm899, %v894, %v896
      %v901 = vsel %vm899, %v896, %v898
      %v903 = vsel %vm310, %v874, 0
      %v906 = vsel %vm314, %v900, 0
      %v909 = vsel %vm314, %v901, 0
      %v912 = vsel %vm314, %v898, 0
      %914 = vmatprep.subr.bf16.mxu0 0
      %915 = vmatpush1.bf16.msra.mxu0 0
      %916 = vmatprep.subr.bf16.mxu0 0
      %917 = vmatpush1.bf16.msra.mxu0 0
      %918 = vmatprep.subr.bf16.mxu0 0
      %919 = vmatpush1.bf16.msra.mxu0 0
      %920 = vmatprep.subr.bf16.mxu0 0
      %921 = vmatpush1.bf16.msra.mxu0 0
      %922 = vmatprep.subr.bf16.mxu0 0
      %923 = vmatpush1.bf16.msra.mxu0 0
      %924 = vmatprep.subr.bf16.mxu0 0
      %925 = vmatpush1.bf16.msra.mxu0 0
      %926 = vmatprep.subr.bf16.mxu0 0
      %927 = vmatpush1.bf16.msra.mxu0 0
      %928 = vmatprep.subr.bf16.mxu0 %v909
      %929 = vmatpush1.bf16.msra.mxu0 %v906
      %930 = vmatprep.subr.bf16.mxu0 0
      %931 = vmatpush2.bf16.msra.mxu0 0
      %932 = vmatprep.subr.bf16.mxu0 0
      %933 = vmatpush2.bf16.msra.mxu0 0
      %934 = vmatprep.subr.bf16.mxu0 0
      %935 = vmatpush2.bf16.msra.mxu0 0
      %936 = vmatprep.subr.bf16.mxu0 0
      %937 = vmatpush2.bf16.msra.mxu0 0
      %938 = vmatprep.subr.bf16.mxu0 0
      %939 = vmatpush2.bf16.msra.mxu0 0
      %940 = vmatprep.subr.bf16.mxu0 0
      %941 = vmatpush2.bf16.msra.mxu0 0
      %942 = vmatprep.subr.bf16.mxu0 0
      %943 = vmatpush2.bf16.msra.mxu0 0
      %944 = vmatprep.subr.bf16.mxu0 0
      %945 = vmatpush2.bf16.msra.mxu0 0
      %946 = vmatprep.mubr.bf16.mxu0 0
      %947 = vmatmul.mubr.bf16.gmra.mxu0 %v903
      %v948 = vpop.f32.mrf.mxu0
      %v949 = vadd.f32 0.0, %v948
      %v950 = vpop.f32.mrf.mxu0
      %v951 = vadd.f32 0.0, %v950
      %v952 = vpop.f32.mrf.mxu0
      %v953 = vpop.f32.mrf.mxu0
      %954 = vdwg.mxu0
      %955 = vmatprep.subr.bf16.mxu0 0
      %956 = vmatpush1.bf16.msra.mxu0 0
      %957 = vmatprep.subr.bf16.mxu0 0
      %958 = vmatpush1.bf16.msra.mxu0 0
      %959 = vmatprep.subr.bf16.mxu0 0
      %960 = vmatpush1.bf16.msra.mxu0 0
      %961 = vmatprep.subr.bf16.mxu0 0
      %962 = vmatpush1.bf16.msra.mxu0 0
      %963 = vmatprep.subr.bf16.mxu0 0
      %964 = vmatpush1.bf16.msra.mxu0 0
      %965 = vmatprep.subr.bf16.mxu0 0
      %966 = vmatpush1.bf16.msra.mxu0 0
      %967 = vmatprep.subr.bf16.mxu0 0
      %968 = vmatpush1.bf16.msra.mxu0 0
      %969 = vmatprep.subr.bf16.mxu0 0
      %970 = vmatpush1.bf16.msra.mxu0 %v912
      %971 = vmatprep.subr.bf16.mxu0 0
      %972 = vmatpush2.bf16.msra.mxu0 0
      %973 = vmatprep.subr.bf16.mxu0 0
      %974 = vmatpush2.bf16.msra.mxu0 0
      %975 = vmatprep.subr.bf16.mxu0 0
      %976 = vmatpush2.bf16.msra.mxu0 0
      %977 = vmatprep.subr.bf16.mxu0 0
      %978 = vmatpush2.bf16.msra.mxu0 0
      %979 = vmatprep.subr.bf16.mxu0 0
      %980 = vmatpush2.bf16.msra.mxu0 0
      %981 = vmatprep.subr.bf16.mxu0 0
      %982 = vmatpush2.bf16.msra.mxu0 0
      %983 = vmatprep.subr.bf16.mxu0 0
      %984 = vmatpush2.bf16.msra.mxu0 0
      %985 = vmatprep.subr.bf16.mxu0 0
      %986 = vmatpush2.bf16.msra.mxu0 0
      %987 = vmatprep.mubr.bf16.mxu0 0
      %988 = vmatmul.mubr.bf16.gmra.mxu0 %v903
      %v989 = vpop.f32.mrf.mxu0
      %v990 = vadd.f32 0.0, %v989
      %v991 = vpop.f32.mrf.mxu0
      %v992 = vpop.f32.mrf.mxu0
      %v993 = vpop.f32.mrf.mxu0
      %994 = vdwg.mxu0
      %v995 = vadd.f32 %v870, %v949
      %v996 = vadd.f32 %v871, %v951
      %v997 = vadd.f32 %v872, %v990
      %s998 = scalar_lea.vmem %s1, 24
      %v999 = vld [vmem:[%s998] sm:$0xf]
      %v1000 = vld [vmem:[%s219] sm:$0x3f]
      %v1002 = vcombine.high %v1000, %v1000
      %v1004 = vunpack.c.l.s4 1983009808
      %v1005 = vunpack.c.0.s8 %v1004
      %v1006 = vlaneseq
      %v1007 = vshrl.u32 %v1006, 7
      %v1008 = vsub.s32 %v1005, %v1007
      %v1009 = vrot.slane %v1000, %v1008
      %v1011 = vunpack.c.l.s4 1983009808
      %v1012 = vunpack.c.0.s8 %v1011
      %v1013 = vlaneseq
      %v1014 = vshrl.u32 %v1013, 7
      %v1015 = vsub.s32 %v1012, %v1014
      %v1016 = vrot.slane %v1002, %v1015
      %v1017 = vcombine.high %v1009, %v1009
      %1018 = vrot.lane.b32.xlu0 %v1009, 92
      %v1019 = vpop.permute.xlu0 %1018
      %1020 = vrot.lane.b32.xlu0 %v1017, 92
      %v1021 = vpop.permute.xlu0 %1020
      %1022 = vrot.lane.b32.xlu0 %v1016, 92
      %v1023 = vpop.permute.xlu0 %1022
      %vm1024 = vcmask 752640
      %v1025 = vsel %vm1024, %v1019, %v1021
      %v1026 = vsel %vm1024, %v1021, %v1023
      %v1028 = vsel %vm310, %v999, 0
      %v1031 = vsel %vm314, %v1025, 0
      %v1034 = vsel %vm314, %v1026, 0
      %v1037 = vsel %vm314, %v1023, 0
      %1039 = vmatprep.subr.bf16.mxu0 0
      %1040 = vmatpush1.bf16.msra.mxu0 0
      %1041 = vmatprep.subr.bf16.mxu0 0
      %1042 = vmatpush1.bf16.msra.mxu0 0
      %1043 = vmatprep.subr.bf16.mxu0 0
      %1044 = vmatpush1.bf16.msra.mxu0 0
      %1045 = vmatprep.subr.bf16.mxu0 0
      %1046 = vmatpush1.bf16.msra.mxu0 0
      %1047 = vmatprep.subr.bf16.mxu0 0
      %1048 = vmatpush1.bf16.msra.mxu0 0
      %1049 = vmatprep.subr.bf16.mxu0 0
      %1050 = vmatpush1.bf16.msra.mxu0 0
      %1051 = vmatprep.subr.bf16.mxu0 0
      %1052 = vmatpush1.bf16.msra.mxu0 0
      %1053 = vmatprep.subr.bf16.mxu0 %v1034
      %1054 = vmatpush1.bf16.msra.mxu0 %v1031
      %1055 = vmatprep.subr.bf16.mxu0 0
      %1056 = vmatpush2.bf16.msra.mxu0 0
      %1057 = vmatprep.subr.bf16.mxu0 0
      %1058 = vmatpush2.bf16.msra.mxu0 0
      %1059 = vmatprep.subr.bf16.mxu0 0
      %1060 = vmatpush2.bf16.msra.mxu0 0
      %1061 = vmatprep.subr.bf16.mxu0 0
      %1062 = vmatpush2.bf16.msra.mxu0 0
      %1063 = vmatprep.subr.bf16.mxu0 0
      %1064 = vmatpush2.bf16.msra.mxu0 0
      %1065 = vmatprep.subr.bf16.mxu0 0
      %1066 = vmatpush2.bf16.msra.mxu0 0
      %1067 = vmatprep.subr.bf16.mxu0 0
      %1068 = vmatpush2.bf16.msra.mxu0 0
      %1069 = vmatprep.subr.bf16.mxu0 0
      %1070 = vmatpush2.bf16.msra.mxu0 0
      %1071 = vmatprep.mubr.bf16.mxu0 0
      %1072 = vmatmul.mubr.bf16.gmra.mxu0 %v1028
      %v1073 = vpop.f32.mrf.mxu0
      %v1074 = vadd.f32 0.0, %v1073
      %v1075 = vpop.f32.mrf.mxu0
      %v1076 = vadd.f32 0.0, %v1075
      %v1077 = vpop.f32.mrf.mxu0
      %v1078 = vpop.f32.mrf.mxu0
      %1079 = vdwg.mxu0
      %1080 = vmatprep.subr.bf16.mxu0 0
      %1081 = vmatpush1.bf16.msra.mxu0 0
      %1082 = vmatprep.subr.bf16.mxu0 0
      %1083 = vmatpush1.bf16.msra.mxu0 0
      %1084 = vmatprep.subr.bf16.mxu0 0
      %1085 = vmatpush1.bf16.msra.mxu0 0
      %1086 = vmatprep.subr.bf16.mxu0 0
      %1087 = vmatpush1.bf16.msra.mxu0 0
      %1088 = vmatprep.subr.bf16.mxu0 0
      %1089 = vmatpush1.bf16.msra.mxu0 0
      %1090 = vmatprep.subr.bf16.mxu0 0
      %1091 = vmatpush1.bf16.msra.mxu0 0
      %1092 = vmatprep.subr.bf16.mxu0 0
      %1093 = vmatpush1.bf16.msra.mxu0 0
      %1094 = vmatprep.subr.bf16.mxu0 0
      %1095 = vmatpush1.bf16.msra.mxu0 %v1037
      %1096 = vmatprep.subr.bf16.mxu0 0
      %1097 = vmatpush2.bf16.msra.mxu0 0
      %1098 = vmatprep.subr.bf16.mxu0 0
      %1099 = vmatpush2.bf16.msra.mxu0 0
      %1100 = vmatprep.subr.bf16.mxu0 0
      %1101 = vmatpush2.bf16.msra.mxu0 0
      %1102 = vmatprep.subr.bf16.mxu0 0
      %1103 = vmatpush2.bf16.msra.mxu0 0
      %1104 = vmatprep.subr.bf16.mxu0 0
      %1105 = vmatpush2.bf16.msra.mxu0 0
      %1106 = vmatprep.subr.bf16.mxu0 0
      %1107 = vmatpush2.bf16.msra.mxu0 0
      %1108 = vmatprep.subr.bf16.mxu0 0
      %1109 = vmatpush2.bf16.msra.mxu0 0
      %1110 = vmatprep.subr.bf16.mxu0 0
      %1111 = vmatpush2.bf16.msra.mxu0 0
      %1112 = vmatprep.mubr.bf16.mxu0 0
      %1113 = vmatmul.mubr.bf16.gmra.mxu0 %v1028
      %v1114 = vpop.f32.mrf.mxu0
      %v1115 = vadd.f32 0.0, %v1114
      %v1116 = vpop.f32.mrf.mxu0
      %v1117 = vpop.f32.mrf.mxu0
      %v1118 = vpop.f32.mrf.mxu0
      %1119 = vdwg.mxu0
      %v1120 = vadd.f32 %v995, %v1074
      %v1121 = vadd.f32 %v996, %v1076
      %v1122 = vadd.f32 %v997, %v1115
      %s1123 = scalar_lea.vmem %s1, 28
      %v1124 = vld [vmem:[%s1123] sm:$0xf]
      %v1125 = vld [vmem:[%s219] sm:$0x3f]
      %v1127 = vcombine.high %v1125, %v1125
      %v1129 = vunpack.c.l.s4 1983009808
      %v1130 = vunpack.c.0.s8 %v1129
      %v1131 = vlaneseq
      %v1132 = vshrl.u32 %v1131, 7
      %v1133 = vsub.s32 %v1130, %v1132
      %v1134 = vrot.slane %v1125, %v1133
      %v1136 = vunpack.c.l.s4 1983009808
      %v1137 = vunpack.c.0.s8 %v1136
      %v1138 = vlaneseq
      %v1139 = vshrl.u32 %v1138, 7
      %v1140 = vsub.s32 %v1137, %v1139
      %v1141 = vrot.slane %v1127, %v1140
      %v1142 = vcombine.high %v1134, %v1134
      %1143 = vrot.lane.b32.xlu0 %v1134, 91
      %v1144 = vpop.permute.xlu0 %1143
      %1145 = vrot.lane.b32.xlu0 %v1142, 91
      %v1146 = vpop.permute.xlu0 %1145
      %1147 = vrot.lane.b32.xlu0 %v1141, 91
      %v1148 = vpop.permute.xlu0 %1147
      %vm1149 = vcmask 744448
      %v1150 = vsel %vm1149, %v1144, %v1146
      %v1151 = vsel %vm1149, %v1146, %v1148
      %v1153 = vsel %vm310, %v1124, 0
      %v1156 = vsel %vm314, %v1150, 0
      %v1159 = vsel %vm314, %v1151, 0
      %v1162 = vsel %vm314, %v1148, 0
      %1164 = vmatprep.subr.bf16.mxu0 0
      %1165 = vmatpush1.bf16.msra.mxu0 0
      %1166 = vmatprep.subr.bf16.mxu0 0
      %1167 = vmatpush1.bf16.msra.mxu0 0
      %1168 = vmatprep.subr.bf16.mxu0 0
      %1169 = vmatpush1.bf16.msra.mxu0 0
      %1170 = vmatprep.subr.bf16.mxu0 0
      %1171 = vmatpush1.bf16.msra.mxu0 0
      %1172 = vmatprep.subr.bf16.mxu0 0
      %1173 = vmatpush1.bf16.msra.mxu0 0
      %1174 = vmatprep.subr.bf16.mxu0 0
      %1175 = vmatpush1.bf16.msra.mxu0 0
      %1176 = vmatprep.subr.bf16.mxu0 0
      %1177 = vmatpush1.bf16.msra.mxu0 0
      %1178 = vmatprep.subr.bf16.mxu0 %v1159
      %1179 = vmatpush1.bf16.msra.mxu0 %v1156
      %1180 = vmatprep.subr.bf16.mxu0 0
      %1181 = vmatpush2.bf16.msra.mxu0 0
      %1182 = vmatprep.subr.bf16.mxu0 0
      %1183 = vmatpush2.bf16.msra.mxu0 0
      %1184 = vmatprep.subr.bf16.mxu0 0
      %1185 = vmatpush2.bf16.msra.mxu0 0
      %1186 = vmatprep.subr.bf16.mxu0 0
      %1187 = vmatpush2.bf16.msra.mxu0 0
      %1188 = vmatprep.subr.bf16.mxu0 0
      %1189 = vmatpush2.bf16.msra.mxu0 0
      %1190 = vmatprep.subr.bf16.mxu0 0
      %1191 = vmatpush2.bf16.msra.mxu0 0
      %1192 = vmatprep.subr.bf16.mxu0 0
      %1193 = vmatpush2.bf16.msra.mxu0 0
      %1194 = vmatprep.subr.bf16.mxu0 0
      %1195 = vmatpush2.bf16.msra.mxu0 0
      %1196 = vmatprep.mubr.bf16.mxu0 0
      %1197 = vmatmul.mubr.bf16.gmra.mxu0 %v1153
      %v1198 = vpop.f32.mrf.mxu0
      %v1199 = vadd.f32 0.0, %v1198
      %v1200 = vpop.f32.mrf.mxu0
      %v1201 = vadd.f32 0.0, %v1200
      %v1202 = vpop.f32.mrf.mxu0
      %v1203 = vpop.f32.mrf.mxu0
      %1204 = vdwg.mxu0
      %1205 = vmatprep.subr.bf16.mxu0 0
      %1206 = vmatpush1.bf16.msra.mxu0 0
      %1207 = vmatprep.subr.bf16.mxu0 0
      %1208 = vmatpush1.bf16.msra.mxu0 0
      %1209 = vmatprep.subr.bf16.mxu0 0
      %1210 = vmatpush1.bf16.msra.mxu0 0
      %1211 = vmatprep.subr.bf16.mxu0 0
      %1212 = vmatpush1.bf16.msra.mxu0 0
      %1213 = vmatprep.subr.bf16.mxu0 0
      %1214 = vmatpush1.bf16.msra.mxu0 0
      %1215 = vmatprep.subr.bf16.mxu0 0
      %1216 = vmatpush1.bf16.msra.mxu0 0
      %1217 = vmatprep.subr.bf16.mxu0 0
      %1218 = vmatpush1.bf16.msra.mxu0 0
      %1219 = vmatprep.subr.bf16.mxu0 0
      %1220 = vmatpush1.bf16.msra.mxu0 %v1162
      %1221 = vmatprep.subr.bf16.mxu0 0
      %1222 = vmatpush2.bf16.msra.mxu0 0
      %1223 = vmatprep.subr.bf16.mxu0 0
      %1224 = vmatpush2.bf16.msra.mxu0 0
      %1225 = vmatprep.subr.bf16.mxu0 0
      %1226 = vmatpush2.bf16.msra.mxu0 0
      %1227 = vmatprep.subr.bf16.mxu0 0
      %1228 = vmatpush2.bf16.msra.mxu0 0
      %1229 = vmatprep.subr.bf16.mxu0 0
      %1230 = vmatpush2.bf16.msra.mxu0 0
      %1231 = vmatprep.subr.bf16.mxu0 0
      %1232 = vmatpush2.bf16.msra.mxu0 0
      %1233 = vmatprep.subr.bf16.mxu0 0
      %1234 = vmatpush2.bf16.msra.mxu0 0
      %1235 = vmatprep.subr.bf16.mxu0 0
      %1236 = vmatpush2.bf16.msra.mxu0 0
      %1237 = vmatprep.mubr.bf16.mxu0 0
      %1238 = vmatmul.mubr.bf16.gmra.mxu0 %v1153
      %v1239 = vpop.f32.mrf.mxu0
      %v1240 = vadd.f32 0.0, %v1239
      %v1241 = vpop.f32.mrf.mxu0
      %v1242 = vpop.f32.mrf.mxu0
      %v1243 = vpop.f32.mrf.mxu0
      %1244 = vdwg.mxu0
      %v1245 = vadd.f32 %v1120, %v1199
      %v1246 = vadd.f32 %v1121, %v1201
      %v1247 = vadd.f32 %v1122, %v1240
      %s1248 = scalar_lea.vmem %s1, 32
      %v1249 = vld [vmem:[%s1248] sm:$0xf]
      %v1250 = vld [vmem:[%s219] sm:$0x3f]
      %v1252 = vcombine.high %v1250, %v1250
      %v1254 = vunpack.c.l.s4 1983009808
      %v1255 = vunpack.c.0.s8 %v1254
      %v1256 = vlaneseq
      %v1257 = vshrl.u32 %v1256, 7
      %v1258 = vsub.s32 %v1255, %v1257
      %v1259 = vrot.slane %v1250, %v1258
      %v1261 = vunpack.c.l.s4 1983009808
      %v1262 = vunpack.c.0.s8 %v1261
      %v1263 = vlaneseq
      %v1264 = vshrl.u32 %v1263, 7
      %v1265 = vsub.s32 %v1262, %v1264
      %v1266 = vrot.slane %v1252, %v1265
      %v1267 = vcombine.high %v1259, %v1259
      %1268 = vrot.lane.b32.xlu0 %v1259, 90
      %v1269 = vpop.permute.xlu0 %1268
      %1270 = vrot.lane.b32.xlu0 %v1267, 90
      %v1271 = vpop.permute.xlu0 %1270
      %1272 = vrot.lane.b32.xlu0 %v1266, 90
      %v1273 = vpop.permute.xlu0 %1272
      %vm1274 = vcmask 736256
      %v1275 = vsel %vm1274, %v1269, %v1271
      %v1276 = vsel %vm1274, %v1271, %v1273
      %v1278 = vsel %vm310, %v1249, 0
      %v1281 = vsel %vm314, %v1275, 0
      %v1284 = vsel %vm314, %v1276, 0
      %v1287 = vsel %vm314, %v1273, 0
      %1289 = vmatprep.subr.bf16.mxu0 0
      %1290 = vmatpush1.bf16.msra.mxu0 0
      %1291 = vmatprep.subr.bf16.mxu0 0
      %1292 = vmatpush1.bf16.msra.mxu0 0
      %1293 = vmatprep.subr.bf16.mxu0 0
      %1294 = vmatpush1.bf16.msra.mxu0 0
      %1295 = vmatprep.subr.bf16.mxu0 0
      %1296 = vmatpush1.bf16.msra.mxu0 0
      %1297 = vmatprep.subr.bf16.mxu0 0
      %1298 = vmatpush1.bf16.msra.mxu0 0
      %1299 = vmatprep.subr.bf16.mxu0 0
      %1300 = vmatpush1.bf16.msra.mxu0 0
      %1301 = vmatprep.subr.bf16.mxu0 0
      %1302 = vmatpush1.bf16.msra.mxu0 0
      %1303 = vmatprep.subr.bf16.mxu0 %v1284
      %1304 = vmatpush1.bf16.msra.mxu0 %v1281
      %1305 = vmatprep.subr.bf16.mxu0 0
      %1306 = vmatpush2.bf16.msra.mxu0 0
      %1307 = vmatprep.subr.bf16.mxu0 0
      %1308 = vmatpush2.bf16.msra.mxu0 0
      %1309 = vmatprep.subr.bf16.mxu0 0
      %1310 = vmatpush2.bf16.msra.mxu0 0
      %1311 = vmatprep.subr.bf16.mxu0 0
      %1312 = vmatpush2.bf16.msra.mxu0 0
      %1313 = vmatprep.subr.bf16.mxu0 0
      %1314 = vmatpush2.bf16.msra.mxu0 0
      %1315 = vmatprep.subr.bf16.mxu0 0
      %1316 = vmatpush2.bf16.msra.mxu0 0
      %1317 = vmatprep.subr.bf16.mxu0 0
      %1318 = vmatpush2.bf16.msra.mxu0 0
      %1319 = vmatprep.subr.bf16.mxu0 0
      %1320 = vmatpush2.bf16.msra.mxu0 0
      %1321 = vmatprep.mubr.bf16.mxu0 0
      %1322 = vmatmul.mubr.bf16.gmra.mxu0 %v1278
      %v1323 = vpop.f32.mrf.mxu0
      %v1324 = vadd.f32 0.0, %v1323
      %v1325 = vpop.f32.mrf.mxu0
      %v1326 = vadd.f32 0.0, %v1325
      %v1327 = vpop.f32.mrf.mxu0
      %v1328 = vpop.f32.mrf.mxu0
      %1329 = vdwg.mxu0
      %1330 = vmatprep.subr.bf16.mxu0 0
      %1331 = vmatpush1.bf16.msra.mxu0 0
      %1332 = vmatprep.subr.bf16.mxu0 0
      %1333 = vmatpush1.bf16.msra.mxu0 0
      %1334 = vmatprep.subr.bf16.mxu0 0
      %1335 = vmatpush1.bf16.msra.mxu0 0
      %1336 = vmatprep.subr.bf16.mxu0 0
      %1337 = vmatpush1.bf16.msra.mxu0 0
      %1338 = vmatprep.subr.bf16.mxu0 0
      %1339 = vmatpush1.bf16.msra.mxu0 0
      %1340 = vmatprep.subr.bf16.mxu0 0
      %1341 = vmatpush1.bf16.msra.mxu0 0
      %1342 = vmatprep.subr.bf16.mxu0 0
      %1343 = vmatpush1.bf16.msra.mxu0 0
      %1344 = vmatprep.subr.bf16.mxu0 0
      %1345 = vmatpush1.bf16.msra.mxu0 %v1287
      %1346 = vmatprep.subr.bf16.mxu0 0
      %1347 = vmatpush2.bf16.msra.mxu0 0
      %1348 = vmatprep.subr.bf16.mxu0 0
      %1349 = vmatpush2.bf16.msra.mxu0 0
      %1350 = vmatprep.subr.bf16.mxu0 0
      %1351 = vmatpush2.bf16.msra.mxu0 0
      %1352 = vmatprep.subr.bf16.mxu0 0
      %1353 = vmatpush2.bf16.msra.mxu0 0
      %1354 = vmatprep.subr.bf16.mxu0 0
      %1355 = vmatpush2.bf16.msra.mxu0 0
      %1356 = vmatprep.subr.bf16.mxu0 0
      %1357 = vmatpush2.bf16.msra.mxu0 0
      %1358 = vmatprep.subr.bf16.mxu0 0
      %1359 = vmatpush2.bf16.msra.mxu0 0
      %1360 = vmatprep.subr.bf16.mxu0 0
      %1361 = vmatpush2.bf16.msra.mxu0 0
      %1362 = vmatprep.mubr.bf16.mxu0 0
      %1363 = vmatmul.mubr.bf16.gmra.mxu0 %v1278
      %v1364 = vpop.f32.mrf.mxu0
      %v1365 = vadd.f32 0.0, %v1364
      %v1366 = vpop.f32.mrf.mxu0
      %v1367 = vpop.f32.mrf.mxu0
      %v1368 = vpop.f32.mrf.mxu0
      %1369 = vdwg.mxu0
      %v1370 = vadd.f32 %v1245, %v1324
      %v1371 = vadd.f32 %v1246, %v1326
      %v1372 = vadd.f32 %v1247, %v1365
      %1374 = vset.pattern.permute.xlu0 0
      %1375 = vperm.xlu0 %1374, %v224
      %v1376 = vpop.permute.xlu0 %1375
      %v1378 = vadd.f32 %v1370, %v1376
      %v1379 = vadd.f32 %v1371, %v1376
      %v1380 = vadd.f32 %v1372, %v1376
      %v1381 = vmax.f32 %v1378, 0.0
      %v1382 = vmax.f32 %v1379, 0.0
      %v1383 = vmax.f32 %v1380, 0.0
      %v1384 = vsel %vm277, 1, 0
      %v1385 = vsel %vm278, 1, 0
      %v1386 = vsel %vm279, 1, 0
      %vm1387 = vcmp.eq.s32.totalorder %v1384, 1
      %vm1388 = vcmp.eq.s32.totalorder %v1385, 1
      %vm1389 = vcmp.eq.s32.totalorder %v1386, 1
      %v1390 = vsel %vm1387, %v1381, 0.0
      %v1391 = vsel %vm1388, %v1382, 0.0
      %v1392 = vsel %vm1389, %v1383, 0.0
      %v1393 = vadd.f32 %v1390, %v1391
      %vm1394 = vcmask 261120
      %v1395 = vsel %vm1394, %v1392, 0.0
      %v1396 = vadd.f32 %v1393, %v1395
      %1397 = vadd.xlane.f32.xlu0 %v1396
      %v1398 = vpop.xlane.xlu0 %1397
      %v1399 = vmul.f32 %v1398, 0.00390625
      %v1400 = vld [vmem:[%s3] sm:$0x1]
      %v1401 = vld [vmem:[#allocation2] sm:$0x1]
      %vm1402 = vcmask 64512
      %v1404 = vsel %vm1402, %v1400, 0
      %1406 = vmatprep.subr.mxu0 0.0
      %1407 = vmatpush1.msra.mxu0 0.0
      %1408 = vmatprep.subr.mxu0 0.0
      %1409 = vmatpush1.msra.mxu0 0.0
      %1410 = vmatprep.subr.mxu0 0.0
      %1411 = vmatpush1.msra.mxu0 0.0
      %1412 = vmatprep.subr.mxu0 0.0
      %1413 = vmatpush1.msra.mxu0 0.0
      %1414 = vmatprep.subr.mxu0 0.0
      %1415 = vmatpush1.msra.mxu0 0.0
      %1416 = vmatprep.subr.mxu0 0.0
      %1417 = vmatpush1.msra.mxu0 0.0
      %1418 = vmatprep.subr.mxu0 0.0
      %1419 = vmatpush1.msra.mxu0 0.0
      %1420 = vmatprep.subr.mxu0 0.0
      %1421 = vmatpush1.msra.mxu0 0.0
      %1422 = vmatprep.subr.mxu0 0.0
      %1423 = vmatpush1.msra.mxu0 0.0
      %1424 = vmatprep.subr.mxu0 0.0
      %1425 = vmatpush1.msra.mxu0 0.0
      %1426 = vmatprep.subr.mxu0 0.0
      %1427 = vmatpush1.msra.mxu0 0.0
      %1428 = vmatprep.subr.mxu0 0.0
      %1429 = vmatpush1.msra.mxu0 0.0
      %1430 = vmatprep.subr.mxu0 0.0
      %1431 = vmatpush1.msra.mxu0 0.0
      %1432 = vmatprep.subr.mxu0 0.0
      %1433 = vmatpush1.msra.mxu0 0.0
      %1434 = vmatprep.subr.mxu0 0.0
      %1435 = vmatpush1.msra.mxu0 0.0
      %1436 = vmatprep.subr.mxu0 0.0
      %1437 = vmatpush1.msra.mxu0 %v1399
      %1438 = vmatprep.subr.mxu0 0.0
      %1439 = vmatpush2.msra.mxu0 0.0
      %1440 = vmatprep.subr.mxu0 0.0
      %1441 = vmatpush2.msra.mxu0 0.0
      %1442 = vmatprep.subr.mxu0 0.0
      %1443 = vmatpush2.msra.mxu0 0.0
      %1444 = vmatprep.subr.mxu0 0.0
      %1445 = vmatpush2.msra.mxu0 0.0
      %1446 = vmatprep.subr.mxu0 0.0
      %1447 = vmatpush2.msra.mxu0 0.0
      %1448 = vmatprep.subr.mxu0 0.0
      %1449 = vmatpush2.msra.mxu0 0.0
      %1450 = vmatprep.subr.mxu0 0.0
      %1451 = vmatpush2.msra.mxu0 0.0
      %1452 = vmatprep.subr.mxu0 0.0
      %1453 = vmatpush2.msra.mxu0 0.0
      %1454 = vmatprep.subr.mxu0 0.0
      %1455 = vmatpush2.msra.mxu0 0.0
      %1456 = vmatprep.subr.mxu0 0.0
      %1457 = vmatpush2.msra.mxu0 0.0
      %1458 = vmatprep.subr.mxu0 0.0
      %1459 = vmatpush2.msra.mxu0 0.0
      %1460 = vmatprep.subr.mxu0 0.0
      %1461 = vmatpush2.msra.mxu0 0.0
      %1462 = vmatprep.subr.mxu0 0.0
      %1463 = vmatpush2.msra.mxu0 0.0
      %1464 = vmatprep.subr.mxu0 0.0
      %1465 = vmatpush2.msra.mxu0 0.0
      %1466 = vmatprep.subr.mxu0 0.0
      %1467 = vmatpush2.msra.mxu0 0.0
      %1468 = vmatprep.subr.mxu0 0.0
      %1469 = vmatpush2.msra.mxu0 0.0
      %1470 = vmatprep.mubr.f32.mxu0 0.0
      %1471 = vmatmul.mubr.f32.gmra.mxu0 %v1404
      %v1472 = vpop.f32.mrf.mxu0
      %v1473 = vadd.f32 %v1401, %v1472
      %v1474 = vpop.f32.mrf.mxu0
      %1475 = vdwg.mxu0
      %vm1476 = vcmask 0
      %1477 = vst.msk [vmem:[%s222] sm:$0x1] %vm1476, %v1473
      %p1478 = scmp.lt.s32.totalorder %s18, 1
      %s1479 = scalar_select %p1478, %s18, 1
      %s1480 = scalar_lea.vmem %s5, %s1479
      // Predicated region
      $region41: #{tpu_custom_call.1} parent=39 // pred_check
        %p1481 = pneg %p146
      $region42: #{tpu_custom_call.1} parent=39 // pred_check_branch
        %1483 = sbr.rel (%p1481) target = $region44
      $region43: #{tpu_custom_call.1} parent=39 // pred_region
        _
      $region44: #{tpu_custom_call.1} parent=39 // pred_fallthru
        _
    $region40: #{tpu_custom_call.1} parent=5 // pred_fallthru
      _
    %p1484 = scmp.le.s32.totalorder 2, %s13
    // Predicated region
    $region45: #{tpu_custom_call.1} parent=5 // pred_check
      %p1485 = pneg %p1484
    $region46: #{tpu_custom_call.1} parent=5 // pred_check_branch
      %1487 = sbr.rel (%p1485) target = $region48
    $region47: #{tpu_custom_call.1} parent=5 // pred_region
      %s1488 = ssub.s32 %s13, 2
      // Predicated region
      $region49: #{tpu_custom_call.1} parent=47 // pred_check
        %p1489 = pneg %p152
      $region50: #{tpu_custom_call.1} parent=47 // pred_check_branch
        %1491 = sbr.rel (%p1489) target = $region52
      $region51: #{tpu_custom_call.1} parent=47 // pred_region
        %p1492 = scmp.lt.s32.totalorder %s19, 1
        %s1493 = scalar_select %p1492, %s19, 1
        %s1494 = scalar_lea.vmem %s5, %s1493
      $region52: #{tpu_custom_call.1} parent=47 // pred_fallthru
        _
    $region48: #{tpu_custom_call.1} parent=5 // pred_fallthru
      _
  $region6: #{tpu_custom_call.1} parent=0 // loop_footer
    %s17 = sadd.s32 1, %s13
  $region7: #{tpu_custom_call.1} parent=0 // loop_footer_branch
    %12 = sbr.rel target = $region3
  $region8: #{tpu_custom_call.1} parent=0 // loop_exit
    _

</llo_original>
